<compile_context>
chip_gen: v5e
topology: v5e:2x2
jax: 0.10.0
libtpu: 0.0.40
codegen_flags: <defaults>
</compile_context>

<pallas_src>
import functools
import math

import jax
import jax.numpy as jnp
from jax.experimental import pallas as pl
from jax.experimental.pallas import tpu as pltpu


# ---------------------------------------------------------------------------
# In-kernel helpers
# ---------------------------------------------------------------------------

def _add_layer_norm(x, res, gamma, beta, eps):
    """Fused residual add + LayerNorm (single-pass stats, gamma folded into scale)."""
    s = x + res
    mean = jnp.mean(s, axis=-1, keepdims=True)
    msq = jnp.mean(s * s, axis=-1, keepdims=True)
    var = msq - mean * mean                      # biased variance, as in the PyTorch module
    inv = jax.lax.rsqrt(var + eps)               # EUP rsqrt, no divide pass
    a = gamma * inv                              # (1,D)*(S,1) -> (S,D): gamma folded into scale
    return s * a + (beta - mean * a)


# ---------------------------------------------------------------------------
# Fused encoder kernel: one grid step == one (batch, layer) pair
# ---------------------------------------------------------------------------

def _encoder_layer_kernel(
    x_ref, w_qkv_ref, b_qkv_ref, w_o_ref, b_o_ref, g1_ref, be1_ref,
    w1_ref, b1_ref, w2_ref, b2_ref, g2_ref, be2_ref,
    o_ref, scram_ref, *, num_heads, eps):
    layer = pl.program_id(1)

    # Layer 0 reads the external input; later layers read the activation carried in the
    # output buffer, which stays resident because its block index does not change with `layer`.
    @pl.when(layer == 0)
    def _():
        o_ref[...] = x_ref[...]

    x = o_ref[0]                                   # (S, D) float32
    S, D = x.shape
    H = num_heads
    Dh = D // H
    scale = 1.0 / math.sqrt(Dh)

    residual = x

    # ---- MultiHeadAttention: fused QKV projection (one lane-dense MXU matmul) ----
    qkv = jnp.dot(x, w_qkv_ref[0], preferred_element_type=jnp.float32) + b_qkv_ref[0]  # (S, 3D)

    # Per-head scaled-dot-product attention.  The original model then does a raw
    # (B,H,S,Dh)->(B,S,D) reshape (head axis NOT moved back next to the feature axis);
    # that flatten is reproduced by scattering each head/row result to its flat position
    # in the VMEM scratch `scram_ref` (static slices only).
    for h in range(H):
        base = 3 * Dh * h
        q = qkv[:, base:base + Dh] * scale               # scale folded into q (SxDh, not SxS)
        k = qkv[:, base + Dh:base + 2 * Dh]
        v = qkv[:, base + 2 * Dh:base + 3 * Dh]
        sc = jax.lax.dot_general(q, k, (((1,), (1,)), ((), ())),
                                 preferred_element_type=jnp.float32)   # (S, S)
        m = jnp.max(sc, axis=-1, keepdims=True)
        p = jnp.exp(sc - m)
        p = p * pl.reciprocal(jnp.sum(p, axis=-1, keepdims=True), approx=True)
        vals = jnp.dot(p, v, preferred_element_type=jnp.float32)       # (S, Dh)
        for srow in range(S):
            flat = h * S + srow                    # row of the (H*S, Dh) flatten
            r = flat // H                          # destination row in the (S, D) view
            c = (flat % H) * Dh                    # destination column offset
            scram_ref[r:r + 1, c:c + Dh] = vals[srow:srow + 1, :]

    attn_out = (jnp.dot(scram_ref[...], w_o_ref[0], preferred_element_type=jnp.float32)
                + b_o_ref[0])                                           # (S, D)

    # drop_1 is identity in eval mode; residual add fused into LayerNorm.
    x = _add_layer_norm(attn_out, residual, g1_ref[0], be1_ref[0], eps)
    residual = x

    # ---- PositionwiseFeedForward (dropout before ReLU is identity in eval mode) ----
    h1 = jnp.maximum(
        jnp.dot(x, w1_ref[0], preferred_element_type=jnp.float32) + b1_ref[0], 0.0)
    h2 = jnp.dot(h1, w2_ref[0], preferred_element_type=jnp.float32) + b2_ref[0]
    x = _add_layer_norm(h2, residual, g2_ref[0], be2_ref[0], eps)

    o_ref[0] = x.astype(o_ref.dtype)


# ---------------------------------------------------------------------------
# Wrapper: stack per-layer weights and launch the single fused pallas_call
# ---------------------------------------------------------------------------

def transformer_encoder_forward(x, params, *, num_heads, eps=1e-5):
    B, S, D = x.shape
    L = len(params)
    F = params[0]["w_1"].shape[1]
    assert D % num_heads == 0

    stack = lambda name: jnp.stack([p[name] for p in params])
    w_qkv = stack("w_qkv")                              # (L, D, 3D)
    b_qkv = stack("b_qkv").reshape(L, 1, 3 * D)
    w_o = stack("w_o")                                  # (L, D, D)
    b_o = stack("b_o").reshape(L, 1, D)
    g1 = stack("gamma1").reshape(L, 1, D)
    be1 = stack("beta1").reshape(L, 1, D)
    w_1 = stack("w_1")                                  # (L, D, F)
    b_1 = stack("b_1").reshape(L, 1, F)
    w_2 = stack("w_2")                                  # (L, F, D)
    b_2 = stack("b_2").reshape(L, 1, D)
    g2 = stack("gamma2").reshape(L, 1, D)
    be2 = stack("beta2").reshape(L, 1, D)

    def lspec(shape):
        return pl.BlockSpec(shape, lambda b, l: (l, 0, 0))

    x_spec = pl.BlockSpec((1, S, D), lambda b, l: (b, 0, 0))
    in_specs = [
        x_spec,
        lspec((1, D, 3 * D)), lspec((1, 1, 3 * D)),
        lspec((1, D, D)), lspec((1, 1, D)),
        lspec((1, 1, D)), lspec((1, 1, D)),
        lspec((1, D, F)), lspec((1, 1, F)),
        lspec((1, F, D)), lspec((1, 1, D)),
        lspec((1, 1, D)), lspec((1, 1, D)),
    ]

    # Actual per-step VMEM need (weights + activation blocks + scratch), x4 for
    # double-buffering and f32 temporaries; no artificial floor, capped well below
    # a v7x core's 64 MiB physical VMEM.
    weight_bytes = 4 * (D * 3 * D + 3 * D + D * D + D + D * F + F + F * D + D + 4 * D)
    act_bytes = 4 * (3 * S * D)
    vmem_limit = int(min(max(4 * (weight_bytes + act_bytes), 8 * 1024 * 1024),
                         48 * 1024 * 1024))

    kernel = functools.partial(_encoder_layer_kernel, num_heads=num_heads, eps=eps)
    return pl.pallas_call(
        kernel,
        out_shape=jax.ShapeDtypeStruct((B, S, D), x.dtype),
        grid_spec=pltpu.PrefetchScalarGridSpec(
            num_scalar_prefetch=0,
            grid=(B, L),
            in_specs=in_specs,
            out_specs=pl.BlockSpec((1, S, D), lambda b, l: (b, 0, 0)),
            scratch_shapes=[pltpu.VMEM((S, D), jnp.float32)],
        ),
        compiler_params=pltpu.CompilerParams(
            dimension_semantics=("parallel", "arbitrary"),
            vmem_limit_bytes=vmem_limit,
        ),
    )(x, w_qkv, b_qkv, w_o, b_o, g1, be1, w_1, b_1, w_2, b_2, g2, be2)


# ---------------------------------------------------------------------------
# Pure-JAX reference (mirrors the PyTorch module in eval mode, incl. the raw reshape)
# ---------------------------------------------------------------------------

def _layer_norm_ref(x, gamma, beta, eps):
    mean = jnp.mean(x, axis=-1, keepdims=True)
    var = jnp.mean((x - mean) ** 2, axis=-1, keepdims=True)
    std = jnp.sqrt(var + eps)
    return gamma * ((x - mean) / std) + beta


def transformer_encoder_ref(x, params, *, num_heads, eps=1e-5):
    B, S, D = x.shape
    Dh = D // num_heads
    for p in params:
        residual = x
        qkv = x @ p["w_qkv"] + p["b_qkv"]
        qkv = qkv.reshape(B, S, num_heads, 3 * Dh).transpose(0, 2, 1, 3)
        q, k, v = jnp.split(qkv, 3, axis=-1)
        scaled = jnp.einsum("bhqd,bhkd->bhqk", q, k) / math.sqrt(Dh)
        attn = jax.nn.softmax(scaled, axis=-1)
        vals = jnp.einsum("bhqk,bhkd->bhqd", attn, v)        # (B,H,S,Dh)
        vals = vals.reshape(B, S, D)                         # raw reshape, as in the original
        out = vals @ p["w_o"] + p["b_o"]
        x = _layer_norm_ref(out + residual, p["gamma1"], p["beta1"], eps)
        residual = x
        h = jnp.maximum(x @ p["w_1"] + p["b_1"], 0.0)
        h = h @ p["w_2"] + p["b_2"]
        x = _layer_norm_ref(h + residual, p["gamma2"], p["beta2"], eps)
    return x


def init_params(key, d_model, ffn_hidden, num_layers):
    params = []
    for _ in range(num_layers):
        key, k0, k1, k2, k3, k4, k5 = jax.random.split(key, 7)
        params.append({
            "w_qkv": 0.05 * jax.random.normal(k0, (d_model, 3 * d_model), jnp.float32),
            "b_qkv": 0.05 * jax.random.normal(k1, (3 * d_model,), jnp.float32),
            "w_o":   0.05 * jax.random.normal(k2, (d_model, d_model), jnp.float32),
            "b_o":   0.05 * jax.random.normal(k3, (d_model,), jnp.float32),
            "w_1":   0.05 * jax.random.normal(k4, (d_model, ffn_hidden), jnp.float32),
            "b_1":   jnp.zeros((ffn_hidden,), jnp.float32),
            "w_2":   0.05 * jax.random.normal(k5, (ffn_hidden, d_model), jnp.float32),
            "b_2":   jnp.zeros((d_model,), jnp.float32),
            "gamma1": jnp.ones((d_model,), jnp.float32),
            "beta1":  jnp.zeros((d_model,), jnp.float32),
            "gamma2": jnp.ones((d_model,), jnp.float32),
            "beta2":  jnp.zeros((d_model,), jnp.float32),
        })
    return params


if __name__ == "__main__":
    key = jax.random.PRNGKey(0)
    batch, seq = 2, 8
    d_model, num_heads, ffn_hidden, num_layers = 128, 4, 256, 3  # lane-dense feature dims

    key, xk, pk = jax.random.split(key, 3)
    x = jax.random.normal(xk, (batch, seq, d_model), dtype=jnp.float32)
    params = init_params(pk, d_model, ffn_hidden, num_layers)

    fwd = jax.jit(functools.partial(transformer_encoder_forward, num_heads=num_heads))
    out = fwd(x, params)
    jax.block_until_ready(out)

    ref = transformer_encoder_ref(x, params, num_heads=num_heads)
    assert out.shape == x.shape
    err = float(jnp.max(jnp.abs(out - ref)))
    # Tolerance leaves headroom for the EUP approximate reciprocal used in the softmax
    # denominator, compounded over 3 layers.
    assert err < 1e-2, f"mismatch vs reference: {err}"

    print("KERNEL_OK")
</pallas_src>

<mosaic_0001>
module attributes {stable_mosaic.version = 11 : i64} {
  func.func @_encoder_layer_kernel(%arg0: i32, %arg1: i32, %arg2: memref<1x8x128xf32, #tpu.memory_space<vmem>>, %arg3: memref<1x128x384xf32, #tpu.memory_space<vmem>>, %arg4: memref<1x1x384xf32, #tpu.memory_space<vmem>>, %arg5: memref<1x128x128xf32, #tpu.memory_space<vmem>>, %arg6: memref<1x1x128xf32, #tpu.memory_space<vmem>>, %arg7: memref<1x1x128xf32, #tpu.memory_space<vmem>>, %arg8: memref<1x1x128xf32, #tpu.memory_space<vmem>>, %arg9: memref<1x128x256xf32, #tpu.memory_space<vmem>>, %arg10: memref<1x1x256xf32, #tpu.memory_space<vmem>>, %arg11: memref<1x256x128xf32, #tpu.memory_space<vmem>>, %arg12: memref<1x1x128xf32, #tpu.memory_space<vmem>>, %arg13: memref<1x1x128xf32, #tpu.memory_space<vmem>>, %arg14: memref<1x1x128xf32, #tpu.memory_space<vmem>>, %arg15: memref<1x8x128xf32, #tpu.memory_space<vmem>>, %arg16: memref<8x128xf32, #tpu.memory_space<vmem>>) attributes {dimension_semantics = [#tpu.dimension_semantics<parallel>, #tpu.dimension_semantics<arbitrary>], iteration_bounds = array<i64: 2, 3>, scalar_prefetch = 0 : i64, scratch_operands = 1 : i64, tpu.core_type = #tpu.core_type<tc>, window_params = [{transform_indices = @transform_0, window_bounds = array<i64: 1, 8, 128>}, {transform_indices = @transform_1, window_bounds = array<i64: 1, 128, 384>}, {transform_indices = @transform_2, window_bounds = array<i64: 1, 1, 384>}, {transform_indices = @transform_3, window_bounds = array<i64: 1, 128, 128>}, {transform_indices = @transform_4, window_bounds = array<i64: 1, 1, 128>}, {transform_indices = @transform_5, window_bounds = array<i64: 1, 1, 128>}, {transform_indices = @transform_6, window_bounds = array<i64: 1, 1, 128>}, {transform_indices = @transform_7, window_bounds = array<i64: 1, 128, 256>}, {transform_indices = @transform_8, window_bounds = array<i64: 1, 1, 256>}, {transform_indices = @transform_9, window_bounds = array<i64: 1, 256, 128>}, {transform_indices = @transform_10, window_bounds = array<i64: 1, 1, 128>}, {transform_indices = @transform_11, window_bounds = array<i64: 1, 1, 128>}, {transform_indices = @transform_12, window_bounds = array<i64: 1, 1, 128>}, {transform_indices = @transform_13, window_bounds = array<i64: 1, 8, 128>}]} {
    %c0_i32 = arith.constant 0 : i32
    %0 = arith.cmpi eq, %arg1, %c0_i32 : i32
    %1 = arith.extui %0 : i1 to i32
    %c0_i32_0 = arith.constant 0 : i32
    %2 = arith.cmpi ne, %1, %c0_i32_0 : i32
    scf.if %2 {
      %c0_132 = arith.constant 0 : index
      %c0_133 = arith.constant 0 : index
      %c0_134 = arith.constant 0 : index
      %227 = vector.load %arg2[%c0_132, %c0_133, %c0_134] : memref<1x8x128xf32, #tpu.memory_space<vmem>>, vector<1x8x128xf32>
      %c0_135 = arith.constant 0 : index
      %c0_136 = arith.constant 0 : index
      %c0_137 = arith.constant 0 : index
      %228 = vector.load %arg15[%c0_135, %c0_136, %c0_137] : memref<1x8x128xf32, #tpu.memory_space<vmem>>, vector<1x8x128xf32>
      tpu.vector_store %arg15[%c0_135, %c0_136, %c0_137], %227 {strides = array<i32>} : memref<1x8x128xf32, #tpu.memory_space<vmem>>, vector<1x8x128xf32>,
    } else {
    }
    %c0 = arith.constant 0 : index
    %c0_1 = arith.constant 0 : index
    %c0_2 = arith.constant 0 : index
    %3 = vector.load %arg15[%c0, %c0_1, %c0_2] : memref<1x8x128xf32, #tpu.memory_space<vmem>>, vector<1x8x128xf32>
    %4 = vector.shape_cast %3 : vector<1x8x128xf32> to vector<8x128xf32>
    %c0_3 = arith.constant 0 : index
    %c0_4 = arith.constant 0 : index
    %c0_5 = arith.constant 0 : index
    %5 = vector.load %arg3[%c0_3, %c0_4, %c0_5] : memref<1x128x384xf32, #tpu.memory_space<vmem>>, vector<1x128x384xf32>
    %6 = vector.shape_cast %5 : vector<1x128x384xf32> to vector<128x384xf32>
    %cst = arith.constant dense<0.000000e+00> : vector<8x384xf32>
    %7 = tpu.matmul %4, %6, %cst {dimension_numbers = #tpu.dot_dimension_numbers<[1], [0], [0], [1], [0, 0, 1, 1], [], []>} : vector<8x128xf32>, vector<128x384xf32>, vector<8x384xf32> -> vector<8x384xf32>
    %c0_6 = arith.constant 0 : index
    %c0_7 = arith.constant 0 : index
    %c0_8 = arith.constant 0 : index
    %8 = vector.load %arg4[%c0_6, %c0_7, %c0_8] : memref<1x1x384xf32, #tpu.memory_space<vmem>>, vector<1x1x384xf32>
    %9 = vector.shape_cast %8 : vector<1x1x384xf32> to vector<1x384xf32>
    %10 = vector.broadcast %9 : vector<1x384xf32> to vector<8x384xf32>
    %11 = arith.addf %7, %10 : vector<8x384xf32>
    %12 = vector.extract_strided_slice %11 {offsets = [0, 0], sizes = [8, 32], strides = [1, 1]} : vector<8x384xf32> to vector<8x32xf32>
    %cst_9 = arith.constant 0.176776692 : f32
    %13 = vector.broadcast %cst_9 : f32 to vector<8x32xf32>
    %14 = arith.mulf %12, %13 : vector<8x32xf32>
    %15 = vector.extract_strided_slice %11 {offsets = [0, 32], sizes = [8, 32], strides = [1, 1]} : vector<8x384xf32> to vector<8x32xf32>
    %16 = vector.extract_strided_slice %11 {offsets = [0, 64], sizes = [8, 32], strides = [1, 1]} : vector<8x384xf32> to vector<8x32xf32>
    %cst_10 = arith.constant dense<0.000000e+00> : vector<8x8xf32>
    %17 = tpu.matmul %14, %15, %cst_10 {dimension_numbers = #tpu.dot_dimension_numbers<[1], [1], [0], [0], [0, 0, 1, 0], [], []>} : vector<8x32xf32>, vector<8x32xf32>, vector<8x8xf32> -> vector<8x8xf32>
    %cst_11 = arith.constant dense<0xFF800000> : vector<8xf32>
    %18 = vector.multi_reduction <maximumf>, %17, %cst_11 [1] : vector<8x8xf32> to vector<8xf32>
    %19 = vector.shape_cast %18 : vector<8xf32> to vector<8x1xf32>
    %20 = vector.broadcast %19 : vector<8x1xf32> to vector<8x8xf32>
    %21 = arith.subf %17, %20 : vector<8x8xf32>
    %22 = math.exp %21 : vector<8x8xf32>
    %cst_12 = arith.constant dense<0.000000e+00> : vector<8xf32>
    %23 = vector.multi_reduction <add>, %22, %cst_12 [1] : vector<8x8xf32> to vector<8xf32>
    %24 = vector.shape_cast %23 : vector<8xf32> to vector<8x1xf32>
    %25 = tpu.reciprocal %24 {approx = true} : vector<8x1xf32> -> vector<8x1xf32>
    %26 = vector.broadcast %25 : vector<8x1xf32> to vector<8x8xf32>
    %27 = arith.mulf %22, %26 : vector<8x8xf32>
    %cst_13 = arith.constant dense<0.000000e+00> : vector<8x32xf32>
    %28 = tpu.matmul %27, %16, %cst_13 {dimension_numbers = #tpu.dot_dimension_numbers<[1], [0], [0], [1], [0, 0, 1, 1], [], []>} : vector<8x8xf32>, vector<8x32xf32>, vector<8x32xf32> -> vector<8x32xf32>
    %29 = vector.extract_strided_slice %28 {offsets = [0, 0], sizes = [1, 32], strides = [1, 1]} : vector<8x32xf32> to vector<1x32xf32>
    %c0_14 = arith.constant 0 : index
    %c0_15 = arith.constant 0 : index
    %30 = vector.load %arg16[%c0_14, %c0_15] : memref<8x128xf32, #tpu.memory_space<vmem>>, vector<1x32xf32>
    tpu.vector_store %arg16[%c0_14, %c0_15], %29 {strides = array<i32>} : memref<8x128xf32, #tpu.memory_space<vmem>>, vector<1x32xf32>,
    %31 = vector.extract_strided_slice %28 {offsets = [1, 0], sizes = [1, 32], strides = [1, 1]} : vector<8x32xf32> to vector<1x32xf32>
    %c0_16 = arith.constant 0 : index
    %c32 = arith.constant 32 : index
    %32 = vector.load %arg16[%c0_16, %c32] : memref<8x128xf32, #tpu.memory_space<vmem>>, vector<1x32xf32>
    tpu.vector_store %arg16[%c0_16, %c32], %31 {strides = array<i32>} : memref<8x128xf32, #tpu.memory_space<vmem>>, vector<1x32xf32>,
    %33 = vector.extract_strided_slice %28 {offsets = [2, 0], sizes = [1, 32], strides = [1, 1]} : vector<8x32xf32> to vector<1x32xf32>
    %c0_17 = arith.constant 0 : index
    %c64 = arith.constant 64 : index
    %34 = vector.load %arg16[%c0_17, %c64] : memref<8x128xf32, #tpu.memory_space<vmem>>, vector<1x32xf32>
    tpu.vector_store %arg16[%c0_17, %c64], %33 {strides = array<i32>} : memref<8x128xf32, #tpu.memory_space<vmem>>, vector<1x32xf32>,
    %35 = vector.extract_strided_slice %28 {offsets = [3, 0], sizes = [1, 32], strides = [1, 1]} : vector<8x32xf32> to vector<1x32xf32>
    %c0_18 = arith.constant 0 : index
    %c96 = arith.constant 96 : index
    %36 = vector.load %arg16[%c0_18, %c96] : memref<8x128xf32, #tpu.memory_space<vmem>>, vector<1x32xf32>
    tpu.vector_store %arg16[%c0_18, %c96], %35 {strides = array<i32>} : memref<8x128xf32, #tpu.memory_space<vmem>>, vector<1x32xf32>,
    %37 = vector.extract_strided_slice %28 {offsets = [4, 0], sizes = [1, 32], strides = [1, 1]} : vector<8x32xf32> to vector<1x32xf32>
    %c1 = arith.constant 1 : index
    %c0_19 = arith.constant 0 : index
    %38 = vector.load %arg16[%c1, %c0_19] : memref<8x128xf32, #tpu.memory_space<vmem>>, vector<1x32xf32>
    tpu.vector_store %arg16[%c1, %c0_19], %37 {strides = array<i32>} : memref<8x128xf32, #tpu.memory_space<vmem>>, vector<1x32xf32>,
    %39 = vector.extract_strided_slice %28 {offsets = [5, 0], sizes = [1, 32], strides = [1, 1]} : vector<8x32xf32> to vector<1x32xf32>
    %c1_20 = arith.constant 1 : index
    %c32_21 = arith.constant 32 : index
    %40 = vector.load %arg16[%c1_20, %c32_21] : memref<8x128xf32, #tpu.memory_space<vmem>>, vector<1x32xf32>
    tpu.vector_store %arg16[%c1_20, %c32_21], %39 {strides = array<i32>} : memref<8x128xf32, #tpu.memory_space<vmem>>, vector<1x32xf32>,
    %41 = vector.extract_strided_slice %28 {offsets = [6, 0], sizes = [1, 32], strides = [1, 1]} : vector<8x32xf32> to vector<1x32xf32>
    %c1_22 = arith.constant 1 : index
    %c64_23 = arith.constant 64 : index
    %42 = vector.load %arg16[%c1_22, %c64_23] : memref<8x128xf32, #tpu.memory_space<vmem>>, vector<1x32xf32>
    tpu.vector_store %arg16[%c1_22, %c64_23], %41 {strides = array<i32>} : memref<8x128xf32, #tpu.memory_space<vmem>>, vector<1x32xf32>,
    %43 = vector.extract_strided_slice %28 {offsets = [7, 0], sizes = [1, 32], strides = [1, 1]} : vector<8x32xf32> to vector<1x32xf32>
    %c1_24 = arith.constant 1 : index
    %c96_25 = arith.constant 96 : index
    %44 = vector.load %arg16[%c1_24, %c96_25] : memref<8x128xf32, #tpu.memory_space<vmem>>, vector<1x32xf32>
    tpu.vector_store %arg16[%c1_24, %c96_25], %43 {strides = array<i32>} : memref<8x128xf32, #tpu.memory_space<vmem>>, vector<1x32xf32>,
    %45 = vector.extract_strided_slice %11 {offsets = [0, 96], sizes = [8, 32], strides = [1, 1]} : vector<8x384xf32> to vector<8x32xf32>
    %cst_26 = arith.constant 0.176776692 : f32
    %46 = vector.broadcast %cst_26 : f32 to vector<8x32xf32>
    %47 = arith.mulf %45, %46 : vector<8x32xf32>
    %48 = vector.extract_strided_slice %11 {offsets = [0, 128], sizes = [8, 32], strides = [1, 1]} : vector<8x384xf32> to vector<8x32xf32>
    %49 = vector.extract_strided_slice %11 {offsets = [0, 160], sizes = [8, 32], strides = [1, 1]} : vector<8x384xf32> to vector<8x32xf32>
    %cst_27 = arith.constant dense<0.000000e+00> : vector<8x8xf32>
    %50 = tpu.matmul %47, %48, %cst_27 {dimension_numbers = #tpu.dot_dimension_numbers<[1], [1], [0], [0], [0, 0, 1, 0], [], []>} : vector<8x32xf32>, vector<8x32xf32>, vector<8x8xf32> -> vector<8x8xf32>
    %cst_28 = arith.constant dense<0xFF800000> : vector<8xf32>
    %51 = vector.multi_reduction <maximumf>, %50, %cst_28 [1] : vector<8x8xf32> to vector<8xf32>
    %52 = vector.shape_cast %51 : vector<8xf32> to vector<8x1xf32>
    %53 = vector.broadcast %52 : vector<8x1xf32> to vector<8x8xf32>
    %54 = arith.subf %50, %53 : vector<8x8xf32>
    %55 = math.exp %54 : vector<8x8xf32>
    %cst_29 = arith.constant dense<0.000000e+00> : vector<8xf32>
    %56 = vector.multi_reduction <add>, %55, %cst_29 [1] : vector<8x8xf32> to vector<8xf32>
    %57 = vector.shape_cast %56 : vector<8xf32> to vector<8x1xf32>
    %58 = tpu.reciprocal %57 {approx = true} : vector<8x1xf32> -> vector<8x1xf32>
    %59 = vector.broadcast %58 : vector<8x1xf32> to vector<8x8xf32>
    %60 = arith.mulf %55, %59 : vector<8x8xf32>
    %cst_30 = arith.constant dense<0.000000e+00> : vector<8x32xf32>
    %61 = tpu.matmul %60, %49, %cst_30 {dimension_numbers = #tpu.dot_dimension_numbers<[1], [0], [0], [1], [0, 0, 1, 1], [], []>} : vector<8x8xf32>, vector<8x32xf32>, vector<8x32xf32> -> vector<8x32xf32>
    %62 = vector.extract_strided_slice %61 {offsets = [0, 0], sizes = [1, 32], strides = [1, 1]} : vector<8x32xf32> to vector<1x32xf32>
    %c2 = arith.constant 2 : index
    %c0_31 = arith.constant 0 : index
    %63 = vector.load %arg16[%c2, %c0_31] : memref<8x128xf32, #tpu.memory_space<vmem>>, vector<1x32xf32>
    tpu.vector_store %arg16[%c2, %c0_31], %62 {strides = array<i32>} : memref<8x128xf32, #tpu.memory_space<vmem>>, vector<1x32xf32>,
    %64 = vector.extract_strided_slice %61 {offsets = [1, 0], sizes = [1, 32], strides = [1, 1]} : vector<8x32xf32> to vector<1x32xf32>
    %c2_32 = arith.constant 2 : index
    %c32_33 = arith.constant 32 : index
    %65 = vector.load %arg16[%c2_32, %c32_33] : memref<8x128xf32, #tpu.memory_space<vmem>>, vector<1x32xf32>
    tpu.vector_store %arg16[%c2_32, %c32_33], %64 {strides = array<i32>} : memref<8x128xf32, #tpu.memory_space<vmem>>, vector<1x32xf32>,
    %66 = vector.extract_strided_slice %61 {offsets = [2, 0], sizes = [1, 32], strides = [1, 1]} : vector<8x32xf32> to vector<1x32xf32>
    %c2_34 = arith.constant 2 : index
    %c64_35 = arith.constant 64 : index
    %67 = vector.load %arg16[%c2_34, %c64_35] : memref<8x128xf32, #tpu.memory_space<vmem>>, vector<1x32xf32>
    tpu.vector_store %arg16[%c2_34, %c64_35], %66 {strides = array<i32>} : memref<8x128xf32, #tpu.memory_space<vmem>>, vector<1x32xf32>,
    %68 = vector.extract_strided_slice %61 {offsets = [3, 0], sizes = [1, 32], strides = [1, 1]} : vector<8x32xf32> to vector<1x32xf32>
    %c2_36 = arith.constant 2 : index
    %c96_37 = arith.constant 96 : index
    %69 = vector.load %arg16[%c2_36, %c96_37] : memref<8x128xf32, #tpu.memory_space<vmem>>, vector<1x32xf32>
    tpu.vector_store %arg16[%c2_36, %c96_37], %68 {strides = array<i32>} : memref<8x128xf32, #tpu.memory_space<vmem>>, vector<1x32xf32>,
    %70 = vector.extract_strided_slice %61 {offsets = [4, 0], sizes = [1, 32], strides = [1, 1]} : vector<8x32xf32> to vector<1x32xf32>
    %c3 = arith.constant 3 : index
    %c0_38 = arith.constant 0 : index
    %71 = vector.load %arg16[%c3, %c0_38] : memref<8x128xf32, #tpu.memory_space<vmem>>, vector<1x32xf32>
    tpu.vector_store %arg16[%c3, %c0_38], %70 {strides = array<i32>} : memref<8x128xf32, #tpu.memory_space<vmem>>, vector<1x32xf32>,
    %72 = vector.extract_strided_slice %61 {offsets = [5, 0], sizes = [1, 32], strides = [1, 1]} : vector<8x32xf32> to vector<1x32xf32>
    %c3_39 = arith.constant 3 : index
    %c32_40 = arith.constant 32 : index
    %73 = vector.load %arg16[%c3_39, %c32_40] : memref<8x128xf32, #tpu.memory_space<vmem>>, vector<1x32xf32>
    tpu.vector_store %arg16[%c3_39, %c32_40], %72 {strides = array<i32>} : memref<8x128xf32, #tpu.memory_space<vmem>>, vector<1x32xf32>,
    %74 = vector.extract_strided_slice %61 {offsets = [6, 0], sizes = [1, 32], strides = [1, 1]} : vector<8x32xf32> to vector<1x32xf32>
    %c3_41 = arith.constant 3 : index
    %c64_42 = arith.constant 64 : index
    %75 = vector.load %arg16[%c3_41, %c64_42] : memref<8x128xf32, #tpu.memory_space<vmem>>, vector<1x32xf32>
    tpu.vector_store %arg16[%c3_41, %c64_42], %74 {strides = array<i32>} : memref<8x128xf32, #tpu.memory_space<vmem>>, vector<1x32xf32>,
    %76 = vector.extract_strided_slice %61 {offsets = [7, 0], sizes = [1, 32], strides = [1, 1]} : vector<8x32xf32> to vector<1x32xf32>
    %c3_43 = arith.constant 3 : index
    %c96_44 = arith.constant 96 : index
    %77 = vector.load %arg16[%c3_43, %c96_44] : memref<8x128xf32, #tpu.memory_space<vmem>>, vector<1x32xf32>
    tpu.vector_store %arg16[%c3_43, %c96_44], %76 {strides = array<i32>} : memref<8x128xf32, #tpu.memory_space<vmem>>, vector<1x32xf32>,
    %78 = vector.extract_strided_slice %11 {offsets = [0, 192], sizes = [8, 32], strides = [1, 1]} : vector<8x384xf32> to vector<8x32xf32>
    %cst_45 = arith.constant 0.176776692 : f32
    %79 = vector.broadcast %cst_45 : f32 to vector<8x32xf32>
    %80 = arith.mulf %78, %79 : vector<8x32xf32>
    %81 = vector.extract_strided_slice %11 {offsets = [0, 224], sizes = [8, 32], strides = [1, 1]} : vector<8x384xf32> to vector<8x32xf32>
    %82 = vector.extract_strided_slice %11 {offsets = [0, 256], sizes = [8, 32], strides = [1, 1]} : vector<8x384xf32> to vector<8x32xf32>
    %cst_46 = arith.constant dense<0.000000e+00> : vector<8x8xf32>
    %83 = tpu.matmul %80, %81, %cst_46 {dimension_numbers = #tpu.dot_dimension_numbers<[1], [1], [0], [0], [0, 0, 1, 0], [], []>} : vector<8x32xf32>, vector<8x32xf32>, vector<8x8xf32> -> vector<8x8xf32>
    %cst_47 = arith.constant dense<0xFF800000> : vector<8xf32>
    %84 = vector.multi_reduction <maximumf>, %83, %cst_47 [1] : vector<8x8xf32> to vector<8xf32>
    %85 = vector.shape_cast %84 : vector<8xf32> to vector<8x1xf32>
    %86 = vector.broadcast %85 : vector<8x1xf32> to vector<8x8xf32>
    %87 = arith.subf %83, %86 : vector<8x8xf32>
    %88 = math.exp %87 : vector<8x8xf32>
    %cst_48 = arith.constant dense<0.000000e+00> : vector<8xf32>
    %89 = vector.multi_reduction <add>, %88, %cst_48 [1] : vector<8x8xf32> to vector<8xf32>
    %90 = vector.shape_cast %89 : vector<8xf32> to vector<8x1xf32>
    %91 = tpu.reciprocal %90 {approx = true} : vector<8x1xf32> -> vector<8x1xf32>
    %92 = vector.broadcast %91 : vector<8x1xf32> to vector<8x8xf32>
    %93 = arith.mulf %88, %92 : vector<8x8xf32>
    %cst_49 = arith.constant dense<0.000000e+00> : vector<8x32xf32>
    %94 = tpu.matmul %93, %82, %cst_49 {dimension_numbers = #tpu.dot_dimension_numbers<[1], [0], [0], [1], [0, 0, 1, 1], [], []>} : vector<8x8xf32>, vector<8x32xf32>, vector<8x32xf32> -> vector<8x32xf32>
    %95 = vector.extract_strided_slice %94 {offsets = [0, 0], sizes = [1, 32], strides = [1, 1]} : vector<8x32xf32> to vector<1x32xf32>
    %c4 = arith.constant 4 : index
    %c0_50 = arith.constant 0 : index
    %96 = vector.load %arg16[%c4, %c0_50] : memref<8x128xf32, #tpu.memory_space<vmem>>, vector<1x32xf32>
    tpu.vector_store %arg16[%c4, %c0_50], %95 {strides = array<i32>} : memref<8x128xf32, #tpu.memory_space<vmem>>, vector<1x32xf32>,
    %97 = vector.extract_strided_slice %94 {offsets = [1, 0], sizes = [1, 32], strides = [1, 1]} : vector<8x32xf32> to vector<1x32xf32>
    %c4_51 = arith.constant 4 : index
    %c32_52 = arith.constant 32 : index
    %98 = vector.load %arg16[%c4_51, %c32_52] : memref<8x128xf32, #tpu.memory_space<vmem>>, vector<1x32xf32>
    tpu.vector_store %arg16[%c4_51, %c32_52], %97 {strides = array<i32>} : memref<8x128xf32, #tpu.memory_space<vmem>>, vector<1x32xf32>,
    %99 = vector.extract_strided_slice %94 {offsets = [2, 0], sizes = [1, 32], strides = [1, 1]} : vector<8x32xf32> to vector<1x32xf32>
    %c4_53 = arith.constant 4 : index
    %c64_54 = arith.constant 64 : index
    %100 = vector.load %arg16[%c4_53, %c64_54] : memref<8x128xf32, #tpu.memory_space<vmem>>, vector<1x32xf32>
    tpu.vector_store %arg16[%c4_53, %c64_54], %99 {strides = array<i32>} : memref<8x128xf32, #tpu.memory_space<vmem>>, vector<1x32xf32>,
    %101 = vector.extract_strided_slice %94 {offsets = [3, 0], sizes = [1, 32], strides = [1, 1]} : vector<8x32xf32> to vector<1x32xf32>
    %c4_55 = arith.constant 4 : index
    %c96_56 = arith.constant 96 : index
    %102 = vector.load %arg16[%c4_55, %c96_56] : memref<8x128xf32, #tpu.memory_space<vmem>>, vector<1x32xf32>
    tpu.vector_store %arg16[%c4_55, %c96_56], %101 {strides = array<i32>} : memref<8x128xf32, #tpu.memory_space<vmem>>, vector<1x32xf32>,
    %103 = vector.extract_strided_slice %94 {offsets = [4, 0], sizes = [1, 32], strides = [1, 1]} : vector<8x32xf32> to vector<1x32xf32>
    %c5 = arith.constant 5 : index
    %c0_57 = arith.constant 0 : index
    %104 = vector.load %arg16[%c5, %c0_57] : memref<8x128xf32, #tpu.memory_space<vmem>>, vector<1x32xf32>
    tpu.vector_store %arg16[%c5, %c0_57], %103 {strides = array<i32>} : memref<8x128xf32, #tpu.memory_space<vmem>>, vector<1x32xf32>,
    %105 = vector.extract_strided_slice %94 {offsets = [5, 0], sizes = [1, 32], strides = [1, 1]} : vector<8x32xf32> to vector<1x32xf32>
    %c5_58 = arith.constant 5 : index
    %c32_59 = arith.constant 32 : index
    %106 = vector.load %arg16[%c5_58, %c32_59] : memref<8x128xf32, #tpu.memory_space<vmem>>, vector<1x32xf32>
    tpu.vector_store %arg16[%c5_58, %c32_59], %105 {strides = array<i32>} : memref<8x128xf32, #tpu.memory_space<vmem>>, vector<1x32xf32>,
    %107 = vector.extract_strided_slice %94 {offsets = [6, 0], sizes = [1, 32], strides = [1, 1]} : vector<8x32xf32> to vector<1x32xf32>
    %c5_60 = arith.constant 5 : index
    %c64_61 = arith.constant 64 : index
    %108 = vector.load %arg16[%c5_60, %c64_61] : memref<8x128xf32, #tpu.memory_space<vmem>>, vector<1x32xf32>
    tpu.vector_store %arg16[%c5_60, %c64_61], %107 {strides = array<i32>} : memref<8x128xf32, #tpu.memory_space<vmem>>, vector<1x32xf32>,
    %109 = vector.extract_strided_slice %94 {offsets = [7, 0], sizes = [1, 32], strides = [1, 1]} : vector<8x32xf32> to vector<1x32xf32>
    %c5_62 = arith.constant 5 : index
    %c96_63 = arith.constant 96 : index
    %110 = vector.load %arg16[%c5_62, %c96_63] : memref<8x128xf32, #tpu.memory_space<vmem>>, vector<1x32xf32>
    tpu.vector_store %arg16[%c5_62, %c96_63], %109 {strides = array<i32>} : memref<8x128xf32, #tpu.memory_space<vmem>>, vector<1x32xf32>,
    %111 = vector.extract_strided_slice %11 {offsets = [0, 288], sizes = [8, 32], strides = [1, 1]} : vector<8x384xf32> to vector<8x32xf32>
    %cst_64 = arith.constant 0.176776692 : f32
    %112 = vector.broadcast %cst_64 : f32 to vector<8x32xf32>
    %113 = arith.mulf %111, %112 : vector<8x32xf32>
    %114 = vector.extract_strided_slice %11 {offsets = [0, 320], sizes = [8, 32], strides = [1, 1]} : vector<8x384xf32> to vector<8x32xf32>
    %115 = vector.extract_strided_slice %11 {offsets = [0, 352], sizes = [8, 32], strides = [1, 1]} : vector<8x384xf32> to vector<8x32xf32>
    %cst_65 = arith.constant dense<0.000000e+00> : vector<8x8xf32>
    %116 = tpu.matmul %113, %114, %cst_65 {dimension_numbers = #tpu.dot_dimension_numbers<[1], [1], [0], [0], [0, 0, 1, 0], [], []>} : vector<8x32xf32>, vector<8x32xf32>, vector<8x8xf32> -> vector<8x8xf32>
    %cst_66 = arith.constant dense<0xFF800000> : vector<8xf32>
    %117 = vector.multi_reduction <maximumf>, %116, %cst_66 [1] : vector<8x8xf32> to vector<8xf32>
    %118 = vector.shape_cast %117 : vector<8xf32> to vector<8x1xf32>
    %119 = vector.broadcast %118 : vector<8x1xf32> to vector<8x8xf32>
    %120 = arith.subf %116, %119 : vector<8x8xf32>
    %121 = math.exp %120 : vector<8x8xf32>
    %cst_67 = arith.constant dense<0.000000e+00> : vector<8xf32>
    %122 = vector.multi_reduction <add>, %121, %cst_67 [1] : vector<8x8xf32> to vector<8xf32>
    %123 = vector.shape_cast %122 : vector<8xf32> to vector<8x1xf32>
    %124 = tpu.reciprocal %123 {approx = true} : vector<8x1xf32> -> vector<8x1xf32>
    %125 = vector.broadcast %124 : vector<8x1xf32> to vector<8x8xf32>
    %126 = arith.mulf %121, %125 : vector<8x8xf32>
    %cst_68 = arith.constant dense<0.000000e+00> : vector<8x32xf32>
    %127 = tpu.matmul %126, %115, %cst_68 {dimension_numbers = #tpu.dot_dimension_numbers<[1], [0], [0], [1], [0, 0, 1, 1], [], []>} : vector<8x8xf32>, vector<8x32xf32>, vector<8x32xf32> -> vector<8x32xf32>
    %128 = vector.extract_strided_slice %127 {offsets = [0, 0], sizes = [1, 32], strides = [1, 1]} : vector<8x32xf32> to vector<1x32xf32>
    %c6 = arith.constant 6 : index
    %c0_69 = arith.constant 0 : index
    %129 = vector.load %arg16[%c6, %c0_69] : memref<8x128xf32, #tpu.memory_space<vmem>>, vector<1x32xf32>
    tpu.vector_store %arg16[%c6, %c0_69], %128 {strides = array<i32>} : memref<8x128xf32, #tpu.memory_space<vmem>>, vector<1x32xf32>,
    %130 = vector.extract_strided_slice %127 {offsets = [1, 0], sizes = [1, 32], strides = [1, 1]} : vector<8x32xf32> to vector<1x32xf32>
    %c6_70 = arith.constant 6 : index
    %c32_71 = arith.constant 32 : index
    %131 = vector.load %arg16[%c6_70, %c32_71] : memref<8x128xf32, #tpu.memory_space<vmem>>, vector<1x32xf32>
    tpu.vector_store %arg16[%c6_70, %c32_71], %130 {strides = array<i32>} : memref<8x128xf32, #tpu.memory_space<vmem>>, vector<1x32xf32>,
    %132 = vector.extract_strided_slice %127 {offsets = [2, 0], sizes = [1, 32], strides = [1, 1]} : vector<8x32xf32> to vector<1x32xf32>
    %c6_72 = arith.constant 6 : index
    %c64_73 = arith.constant 64 : index
    %133 = vector.load %arg16[%c6_72, %c64_73] : memref<8x128xf32, #tpu.memory_space<vmem>>, vector<1x32xf32>
    tpu.vector_store %arg16[%c6_72, %c64_73], %132 {strides = array<i32>} : memref<8x128xf32, #tpu.memory_space<vmem>>, vector<1x32xf32>,
    %134 = vector.extract_strided_slice %127 {offsets = [3, 0], sizes = [1, 32], strides = [1, 1]} : vector<8x32xf32> to vector<1x32xf32>
    %c6_74 = arith.constant 6 : index
    %c96_75 = arith.constant 96 : index
    %135 = vector.load %arg16[%c6_74, %c96_75] : memref<8x128xf32, #tpu.memory_space<vmem>>, vector<1x32xf32>
    tpu.vector_store %arg16[%c6_74, %c96_75], %134 {strides = array<i32>} : memref<8x128xf32, #tpu.memory_space<vmem>>, vector<1x32xf32>,
    %136 = vector.extract_strided_slice %127 {offsets = [4, 0], sizes = [1, 32], strides = [1, 1]} : vector<8x32xf32> to vector<1x32xf32>
    %c7 = arith.constant 7 : index
    %c0_76 = arith.constant 0 : index
    %137 = vector.load %arg16[%c7, %c0_76] : memref<8x128xf32, #tpu.memory_space<vmem>>, vector<1x32xf32>
    tpu.vector_store %arg16[%c7, %c0_76], %136 {strides = array<i32>} : memref<8x128xf32, #tpu.memory_space<vmem>>, vector<1x32xf32>,
    %138 = vector.extract_strided_slice %127 {offsets = [5, 0], sizes = [1, 32], strides = [1, 1]} : vector<8x32xf32> to vector<1x32xf32>
    %c7_77 = arith.constant 7 : index
    %c32_78 = arith.constant 32 : index
    %139 = vector.load %arg16[%c7_77, %c32_78] : memref<8x128xf32, #tpu.memory_space<vmem>>, vector<1x32xf32>
    tpu.vector_store %arg16[%c7_77, %c32_78], %138 {strides = array<i32>} : memref<8x128xf32, #tpu.memory_space<vmem>>, vector<1x32xf32>,
    %140 = vector.extract_strided_slice %127 {offsets = [6, 0], sizes = [1, 32], strides = [1, 1]} : vector<8x32xf32> to vector<1x32xf32>
    %c7_79 = arith.constant 7 : index
    %c64_80 = arith.constant 64 : index
    %141 = vector.load %arg16[%c7_79, %c64_80] : memref<8x128xf32, #tpu.memory_space<vmem>>, vector<1x32xf32>
    tpu.vector_store %arg16[%c7_79, %c64_80], %140 {strides = array<i32>} : memref<8x128xf32, #tpu.memory_space<vmem>>, vector<1x32xf32>,
    %142 = vector.extract_strided_slice %127 {offsets = [7, 0], sizes = [1, 32], strides = [1, 1]} : vector<8x32xf32> to vector<1x32xf32>
    %c7_81 = arith.constant 7 : index
    %c96_82 = arith.constant 96 : index
    %143 = vector.load %arg16[%c7_81, %c96_82] : memref<8x128xf32, #tpu.memory_space<vmem>>, vector<1x32xf32>
    tpu.vector_store %arg16[%c7_81, %c96_82], %142 {strides = array<i32>} : memref<8x128xf32, #tpu.memory_space<vmem>>, vector<1x32xf32>,
    %c0_83 = arith.constant 0 : index
    %c0_84 = arith.constant 0 : index
    %144 = vector.load %arg16[%c0_83, %c0_84] : memref<8x128xf32, #tpu.memory_space<vmem>>, vector<8x128xf32>
    %c0_85 = arith.constant 0 : index
    %c0_86 = arith.constant 0 : index
    %c0_87 = arith.constant 0 : index
    %145 = vector.load %arg5[%c0_85, %c0_86, %c0_87] : memref<1x128x128xf32, #tpu.memory_space<vmem>>, vector<1x128x128xf32>
    %146 = vector.shape_cast %145 : vector<1x128x128xf32> to vector<128x128xf32>
    %cst_88 = arith.constant dense<0.000000e+00> : vector<8x128xf32>
    %147 = tpu.matmul %144, %146, %cst_88 {dimension_numbers = #tpu.dot_dimension_numbers<[1], [0], [0], [1], [0, 0, 1, 1], [], []>} : vector<8x128xf32>, vector<128x128xf32>, vector<8x128xf32> -> vector<8x128xf32>
    %c0_89 = arith.constant 0 : index
    %c0_90 = arith.constant 0 : index
    %c0_91 = arith.constant 0 : index
    %148 = vector.load %arg6[%c0_89, %c0_90, %c0_91] : memref<1x1x128xf32, #tpu.memory_space<vmem>>, vector<1x1x128xf32>
    %149 = vector.shape_cast %148 : vector<1x1x128xf32> to vector<1x128xf32>
    %150 = vector.broadcast %149 : vector<1x128xf32> to vector<8x128xf32>
    %151 = arith.addf %147, %150 : vector<8x128xf32>
    %c0_92 = arith.constant 0 : index
    %c0_93 = arith.constant 0 : index
    %c0_94 = arith.constant 0 : index
    %152 = vector.load %arg7[%c0_92, %c0_93, %c0_94] : memref<1x1x128xf32, #tpu.memory_space<vmem>>, vector<1x1x128xf32>
    %153 = vector.shape_cast %152 : vector<1x1x128xf32> to vector<1x128xf32>
    %c0_95 = arith.constant 0 : index
    %c0_96 = arith.constant 0 : index
    %c0_97 = arith.constant 0 : index
    %154 = vector.load %arg8[%c0_95, %c0_96, %c0_97] : memref<1x1x128xf32, #tpu.memory_space<vmem>>, vector<1x1x128xf32>
    %155 = vector.shape_cast %154 : vector<1x1x128xf32> to vector<1x128xf32>
    %156 = arith.addf %151, %4 : vector<8x128xf32>
    %cst_98 = arith.constant dense<0.000000e+00> : vector<8xf32>
    %157 = vector.multi_reduction <add>, %156, %cst_98 [1] : vector<8x128xf32> to vector<8xf32>
    %158 = vector.shape_cast %157 : vector<8xf32> to vector<8x1xf32>
    %cst_99 = arith.constant 1.280000e+02 : f32
    %159 = vector.broadcast %cst_99 : f32 to vector<8x1xf32>
    %160 = arith.divf %158, %159 : vector<8x1xf32>
    %161 = arith.mulf %156, %156 : vector<8x128xf32>
    %cst_100 = arith.constant dense<0.000000e+00> : vector<8xf32>
    %162 = vector.multi_reduction <add>, %161, %cst_100 [1] : vector<8x128xf32> to vector<8xf32>
    %163 = vector.shape_cast %162 : vector<8xf32> to vector<8x1xf32>
    %cst_101 = arith.constant 1.280000e+02 : f32
    %164 = vector.broadcast %cst_101 : f32 to vector<8x1xf32>
    %165 = arith.divf %163, %164 : vector<8x1xf32>
    %166 = arith.mulf %160, %160 : vector<8x1xf32>
    %167 = arith.subf %165, %166 : vector<8x1xf32>
    %cst_102 = arith.constant 9.99999974E-6 : f32
    %168 = vector.broadcast %cst_102 : f32 to vector<8x1xf32>
    %169 = arith.addf %167, %168 : vector<8x1xf32>
    %170 = math.rsqrt %169 : vector<8x1xf32>
    %171 = vector.broadcast %153 : vector<1x128xf32> to vector<8x128xf32>
    %172 = vector.broadcast %170 : vector<8x1xf32> to vector<8x128xf32>
    %173 = arith.mulf %171, %172 : vector<8x128xf32>
    %174 = arith.mulf %156, %173 : vector<8x128xf32>
    %175 = vector.broadcast %160 : vector<8x1xf32> to vector<8x128xf32>
    %176 = arith.mulf %175, %173 : vector<8x128xf32>
    %177 = vector.broadcast %155 : vector<1x128xf32> to vector<8x128xf32>
    %178 = arith.subf %177, %176 : vector<8x128xf32>
    %179 = arith.addf %174, %178 : vector<8x128xf32>
    %c0_103 = arith.constant 0 : index
    %c0_104 = arith.constant 0 : index
    %c0_105 = arith.constant 0 : index
    %180 = vector.load %arg9[%c0_103, %c0_104, %c0_105] : memref<1x128x256xf32, #tpu.memory_space<vmem>>, vector<1x128x256xf32>
    %181 = vector.shape_cast %180 : vector<1x128x256xf32> to vector<128x256xf32>
    %cst_106 = arith.constant dense<0.000000e+00> : vector<8x256xf32>
    %182 = tpu.matmul %179, %181, %cst_106 {dimension_numbers = #tpu.dot_dimension_numbers<[1], [0], [0], [1], [0, 0, 1, 1], [], []>} : vector<8x128xf32>, vector<128x256xf32>, vector<8x256xf32> -> vector<8x256xf32>
    %c0_107 = arith.constant 0 : index
    %c0_108 = arith.constant 0 : index
    %c0_109 = arith.constant 0 : index
    %183 = vector.load %arg10[%c0_107, %c0_108, %c0_109] : memref<1x1x256xf32, #tpu.memory_space<vmem>>, vector<1x1x256xf32>
    %184 = vector.shape_cast %183 : vector<1x1x256xf32> to vector<1x256xf32>
    %185 = vector.broadcast %184 : vector<1x256xf32> to vector<8x256xf32>
    %186 = arith.addf %182, %185 : vector<8x256xf32>
    %cst_110 = arith.constant 0.000000e+00 : f32
    %187 = vector.broadcast %cst_110 : f32 to vector<8x256xf32>
    %188 = arith.maximumf %186, %187 : vector<8x256xf32>
    %c0_111 = arith.constant 0 : index
    %c0_112 = arith.constant 0 : index
    %c0_113 = arith.constant 0 : index
    %189 = vector.load %arg11[%c0_111, %c0_112, %c0_113] : memref<1x256x128xf32, #tpu.memory_space<vmem>>, vector<1x256x128xf32>
    %190 = vector.shape_cast %189 : vector<1x256x128xf32> to vector<256x128xf32>
    %cst_114 = arith.constant dense<0.000000e+00> : vector<8x128xf32>
    %191 = tpu.matmul %188, %190, %cst_114 {dimension_numbers = #tpu.dot_dimension_numbers<[1], [0], [0], [1], [0, 0, 1, 1], [], []>} : vector<8x256xf32>, vector<256x128xf32>, vector<8x128xf32> -> vector<8x128xf32>
    %c0_115 = arith.constant 0 : index
    %c0_116 = arith.constant 0 : index
    %c0_117 = arith.constant 0 : index
    %192 = vector.load %arg12[%c0_115, %c0_116, %c0_117] : memref<1x1x128xf32, #tpu.memory_space<vmem>>, vector<1x1x128xf32>
    %193 = vector.shape_cast %192 : vector<1x1x128xf32> to vector<1x128xf32>
    %194 = vector.broadcast %193 : vector<1x128xf32> to vector<8x128xf32>
    %195 = arith.addf %191, %194 : vector<8x128xf32>
    %c0_118 = arith.constant 0 : index
    %c0_119 = arith.constant 0 : index
    %c0_120 = arith.constant 0 : index
    %196 = vector.load %arg13[%c0_118, %c0_119, %c0_120] : memref<1x1x128xf32, #tpu.memory_space<vmem>>, vector<1x1x128xf32>
    %197 = vector.shape_cast %196 : vector<1x1x128xf32> to vector<1x128xf32>
    %c0_121 = arith.constant 0 : index
    %c0_122 = arith.constant 0 : index
    %c0_123 = arith.constant 0 : index
    %198 = vector.load %arg14[%c0_121, %c0_122, %c0_123] : memref<1x1x128xf32, #tpu.memory_space<vmem>>, vector<1x1x128xf32>
    %199 = vector.shape_cast %198 : vector<1x1x128xf32> to vector<1x128xf32>
    %200 = arith.addf %195, %179 : vector<8x128xf32>
    %cst_124 = arith.constant dense<0.000000e+00> : vector<8xf32>
    %201 = vector.multi_reduction <add>, %200, %cst_124 [1] : vector<8x128xf32> to vector<8xf32>
    %202 = vector.shape_cast %201 : vector<8xf32> to vector<8x1xf32>
    %cst_125 = arith.constant 1.280000e+02 : f32
    %203 = vector.broadcast %cst_125 : f32 to vector<8x1xf32>
    %204 = arith.divf %202, %203 : vector<8x1xf32>
    %205 = arith.mulf %200, %200 : vector<8x128xf32>
    %cst_126 = arith.constant dense<0.000000e+00> : vector<8xf32>
    %206 = vector.multi_reduction <add>, %205, %cst_126 [1] : vector<8x128xf32> to vector<8xf32>
    %207 = vector.shape_cast %206 : vector<8xf32> to vector<8x1xf32>
    %cst_127 = arith.constant 1.280000e+02 : f32
    %208 = vector.broadcast %cst_127 : f32 to vector<8x1xf32>
    %209 = arith.divf %207, %208 : vector<8x1xf32>
    %210 = arith.mulf %204, %204 : vector<8x1xf32>
    %211 = arith.subf %209, %210 : vector<8x1xf32>
    %cst_128 = arith.constant 9.99999974E-6 : f32
    %212 = vector.broadcast %cst_128 : f32 to vector<8x1xf32>
    %213 = arith.addf %211, %212 : vector<8x1xf32>
    %214 = math.rsqrt %213 : vector<8x1xf32>
    %215 = vector.broadcast %197 : vector<1x128xf32> to vector<8x128xf32>
    %216 = vector.broadcast %214 : vector<8x1xf32> to vector<8x128xf32>
    %217 = arith.mulf %215, %216 : vector<8x128xf32>
    %218 = arith.mulf %200, %217 : vector<8x128xf32>
    %219 = vector.broadcast %204 : vector<8x1xf32> to vector<8x128xf32>
    %220 = arith.mulf %219, %217 : vector<8x128xf32>
    %221 = vector.broadcast %199 : vector<1x128xf32> to vector<8x128xf32>
    %222 = arith.subf %221, %220 : vector<8x128xf32>
    %223 = arith.addf %218, %222 : vector<8x128xf32>
    %c0_129 = arith.constant 0 : index
    %c0_130 = arith.constant 0 : index
    %c0_131 = arith.constant 0 : index
    %224 = vector.load %arg15[%c0_129, %c0_130, %c0_131] : memref<1x8x128xf32, #tpu.memory_space<vmem>>, vector<1x8x128xf32>
    %225 = vector.shape_cast %224 : vector<1x8x128xf32> to vector<8x128xf32>
    %226 = vector.shape_cast %223 : vector<8x128xf32> to vector<1x8x128xf32>
    tpu.vector_store %arg15[%c0_129, %c0_130, %c0_131], %226 {strides = array<i32>} : memref<1x8x128xf32, #tpu.memory_space<vmem>>, vector<1x8x128xf32>,
    return
  }
  func.func @transform_0(%arg0: i32, %arg1: i32) -> (i32, i32, i32) {
    %c0_i32 = arith.constant 0 : i32
    %c0_i32_0 = arith.constant 0 : i32
    %c0_i32_1 = arith.constant 0 : i32
    return %arg0, %c0_i32, %c0_i32_0 : i32, i32, i32
  }
  func.func @transform_1(%arg0: i32, %arg1: i32) -> (i32, i32, i32) {
    %c0_i32 = arith.constant 0 : i32
    %c0_i32_0 = arith.constant 0 : i32
    %c0_i32_1 = arith.constant 0 : i32
    return %arg1, %c0_i32, %c0_i32_0 : i32, i32, i32
  }
  func.func @transform_2(%arg0: i32, %arg1: i32) -> (i32, i32, i32) {
    %c0_i32 = arith.constant 0 : i32
    %c0_i32_0 = arith.constant 0 : i32
    %c0_i32_1 = arith.constant 0 : i32
    return %arg1, %c0_i32, %c0_i32_0 : i32, i32, i32
  }
  func.func @transform_3(%arg0: i32, %arg1: i32) -> (i32, i32, i32) {
    %c0_i32 = arith.constant 0 : i32
    %c0_i32_0 = arith.constant 0 : i32
    %c0_i32_1 = arith.constant 0 : i32
    return %arg1, %c0_i32, %c0_i32_0 : i32, i32, i32
  }
  func.func @transform_4(%arg0: i32, %arg1: i32) -> (i32, i32, i32) {
    %c0_i32 = arith.constant 0 : i32
    %c0_i32_0 = arith.constant 0 : i32
    %c0_i32_1 = arith.constant 0 : i32
    return %arg1, %c0_i32, %c0_i32_0 : i32, i32, i32
  }
  func.func @transform_5(%arg0: i32, %arg1: i32) -> (i32, i32, i32) {
    %c0_i32 = arith.constant 0 : i32
    %c0_i32_0 = arith.constant 0 : i32
    %c0_i32_1 = arith.constant 0 : i32
    return %arg1, %c0_i32, %c0_i32_0 : i32, i32, i32
  }
  func.func @transform_6(%arg0: i32, %arg1: i32) -> (i32, i32, i32) {
    %c0_i32 = arith.constant 0 : i32
    %c0_i32_0 = arith.constant 0 : i32
    %c0_i32_1 = arith.constant 0 : i32
    return %arg1, %c0_i32, %c0_i32_0 : i32, i32, i32
  }
  func.func @transform_7(%arg0: i32, %arg1: i32) -> (i32, i32, i32) {
    %c0_i32 = arith.constant 0 : i32
    %c0_i32_0 = arith.constant 0 : i32
    %c0_i32_1 = arith.constant 0 : i32
    return %arg1, %c0_i32, %c0_i32_0 : i32, i32, i32
  }
  func.func @transform_8(%arg0: i32, %arg1: i32) -> (i32, i32, i32) {
    %c0_i32 = arith.constant 0 : i32
    %c0_i32_0 = arith.constant 0 : i32
    %c0_i32_1 = arith.constant 0 : i32
    return %arg1, %c0_i32, %c0_i32_0 : i32, i32, i32
  }
  func.func @transform_9(%arg0: i32, %arg1: i32) -> (i32, i32, i32) {
    %c0_i32 = arith.constant 0 : i32
    %c0_i32_0 = arith.constant 0 : i32
    %c0_i32_1 = arith.constant 0 : i32
    return %arg1, %c0_i32, %c0_i32_0 : i32, i32, i32
  }
  func.func @transform_10(%arg0: i32, %arg1: i32) -> (i32, i32, i32) {
    %c0_i32 = arith.constant 0 : i32
    %c0_i32_0 = arith.constant 0 : i32
    %c0_i32_1 = arith.constant 0 : i32
    return %arg1, %c0_i32, %c0_i32_0 : i32, i32, i32
  }
  func.func @transform_11(%arg0: i32, %arg1: i32) -> (i32, i32, i32) {
    %c0_i32 = arith.constant 0 : i32
    %c0_i32_0 = arith.constant 0 : i32
    %c0_i32_1 = arith.constant 0 : i32
    return %arg1, %c0_i32, %c0_i32_0 : i32, i32, i32
  }
  func.func @transform_12(%arg0: i32, %arg1: i32) -> (i32, i32, i32) {
    %c0_i32 = arith.constant 0 : i32
    %c0_i32_0 = arith.constant 0 : i32
    %c0_i32_1 = arith.constant 0 : i32
    return %arg1, %c0_i32, %c0_i32_0 : i32, i32, i32
  }
  func.func @transform_13(%arg0: i32, %arg1: i32) -> (i32, i32, i32) {
    %c0_i32 = arith.constant 0 : i32
    %c0_i32_0 = arith.constant 0 : i32
    %c0_i32_1 = arith.constant 0 : i32
    return %arg0, %c0_i32, %c0_i32_0 : i32, i32, i32
  }
}

</mosaic_0001>

<llo_original>
// kernel: transformer_encoder_forward.1
$region0: #{transformer_encoder_forward.1}
  #allocation0 [shape = 'u32[]', space=smem, size = 0x4, offset = 0x4, fixed_abs, tag = 'smem constant byte address 0x4 - core index']
  #allocation1 [shape = 'u32[72,128]{1,0:T(1,128)}', space=vmem, size = 0x9000, scoped, tag = 'internal scratch']
  #allocation2 [shape = 'f32[8,128]{1,0:T(8,128)}', space=vmem, size = 0x1000, scoped, tag = 'scratch operand']
  %s0 = inlined_call_operand.vmem [shape: f32[2,8,128], index: 0, kind: input, shape index: {}]
  %s1 = inlined_call_operand.vmem [shape: f32[3,128,384], index: 1, kind: input, shape index: {}]
  %s2 = inlined_call_operand.vmem [shape: f32[3,1,384], index: 2, kind: input, shape index: {}]
  %s3 = inlined_call_operand.vmem [shape: f32[3,128,128], index: 3, kind: input, shape index: {}]
  %s4 = inlined_call_operand.vmem [shape: f32[3,1,128], index: 4, kind: input, shape index: {}]
  %s5 = inlined_call_operand.vmem [shape: f32[3,1,128], index: 5, kind: input, shape index: {}]
  %s6 = inlined_call_operand.vmem [shape: f32[3,1,128], index: 6, kind: input, shape index: {}]
  %s7 = inlined_call_operand.vmem [shape: f32[3,128,256], index: 7, kind: input, shape index: {}]
  %s8 = inlined_call_operand.vmem [shape: f32[3,1,256], index: 8, kind: input, shape index: {}]
  %s9 = inlined_call_operand.vmem [shape: f32[3,256,128], index: 9, kind: input, shape index: {}]
  %s10 = inlined_call_operand.vmem [shape: f32[3,1,128], index: 10, kind: input, shape index: {}]
  %s11 = inlined_call_operand.vmem [shape: f32[3,1,128], index: 11, kind: input, shape index: {}]
  %s12 = inlined_call_operand.vmem [shape: f32[3,1,128], index: 12, kind: input, shape index: {}]
  %s13 = inlined_call_operand.hbm [shape: f32[2,8,128], index: 13, kind: output, shape index: {}]
  %s14 = sld [smem:[#allocation0]]
  $region89: #{transformer_encoder_forward.1} parent=0
    _
  %s16 = ssub.s32 1, %s14
  %s17 = scalar_select 0, %s16, %s14
  $region1: #{transformer_encoder_forward.1} parent=0
    #allocation3 [shape = 'u8[8192]{0}', space=vmem, size = 0x2000, scoped, tag = 'output window, operand 0']
    #allocation4 [shape = 's32[2]{0}', space=sflag, size = 0x8, scoped, tag = 'scoped memory for transformer_encoder_forward.1']
    %18 = vsyncpa [#allocation4], 0
    %s19 = scalar_lea.sflag [#allocation4], 1
    %20 = vsyncpa %s19, 0
    loop: start=0, step=1, limit=8
    $region2: #{transformer_encoder_forward.1} parent=1 // loop_pre_header
      _
    $region3: #{transformer_encoder_forward.1} parent=1 // loop_header
      %s22 = sphi 0, %s26
      %p23 = scmp.ge.s32.totalorder %s22, 8
      %s29 = sphi 0, %s41
      %s30 = sphi 0, %s37
      %s31 = sphi 0, %s29
      %s32 = sphi 0, %s30
      %s33 = sphi 0, %s31
      %s34 = sphi 0, %s32
      %s44 = sphi 0, %s46
      %s47 = sphi 0, %s44
      %s48 = sphi 0, %s47
      %s64 = sphi 0, %s48
      %s70 = sphi 0, %s72
      %s73 = sphi 0, %s70
      %s74 = sphi 0, %s73
      %s90 = sphi 0, %s74
      %s96 = sphi 0, %s98
      %s99 = sphi 0, %s96
      %s100 = sphi 0, %s99
      %s116 = sphi 0, %s100
      %s122 = sphi 0, %s124
      %s125 = sphi 0, %s122
      %s126 = sphi 0, %s125
      %s142 = sphi 0, %s126
      %s148 = sphi 0, %s150
      %s151 = sphi 0, %s148
      %s152 = sphi 0, %s151
      %s168 = sphi 0, %s152
      %s174 = sphi 0, %s176
      %s177 = sphi 0, %s174
      %s178 = sphi 0, %s177
      %s194 = sphi 0, %s178
      %s200 = sphi 0, %s202
      %s203 = sphi 0, %s200
      %s204 = sphi 0, %s203
      %s220 = sphi 0, %s204
      %s226 = sphi 0, %s228
      %s229 = sphi 0, %s226
      %s230 = sphi 0, %s229
      %s246 = sphi 0, %s230
      %s252 = sphi 0, %s254
      %s255 = sphi 0, %s252
      %s256 = sphi 0, %s255
      %s272 = sphi 0, %s256
      %s278 = sphi 0, %s280
      %s281 = sphi 0, %s278
      %s282 = sphi 0, %s281
      %s298 = sphi 0, %s282
      %s304 = sphi 0, %s306
      %s307 = sphi 0, %s304
      %s308 = sphi 0, %s307
      %s324 = sphi 0, %s308
      %s330 = sphi 0, %s332
      %s333 = sphi 0, %s330
      %s334 = sphi 0, %s333
      %s350 = sphi 0, %s334
      %s356 = sphi 0, %s358
      %s359 = sphi 0, %s356
      %s360 = sphi 0, %s359
      %s376 = sphi 0, %s360
      %s382 = sphi 0, %s384
      %s385 = sphi 0, %s382
      %s386 = sphi 0, %s385
      %s402 = sphi 0, %s386
    $region4: #{transformer_encoder_forward.1} parent=1 // loop_header_branch
      %25 = sbr.rel (%p23) target = $region8
    $region5: #{transformer_encoder_forward.1} parent=1 // loop_body
      %s27 = ssub.s32 %s22, 1
      %s28 = ssub.s32 %s22, 2
      %s35 = sadd.s32 1, %s30
      %p36 = scmp.ge.s32.totalorder %s35, 3
      %s37 = scalar_select %p36, 0, %s35
      %s38 = sadd.s32 1, %s29
      %s39 = scalar_select %p36, %s38, %s29
      %p40 = scmp.ge.s32.totalorder %s39, 2
      %s41 = scalar_select %p40, 0, %s39
      %s42 = ssub.s32 %s29, %s41
      %p43 = scmp.eq.s32.totalorder %s42, 0
      %s45 = sadd.s32 %s44, 1
      %s46 = scalar_select %p43, %s44, %s45
      %p49 = pneg %p43
      %p50 = scmp.eq.s32.totalorder %s22, 5
      %p51 = por %p49, %p50
      %p52 = scmp.ne.s32.totalorder %s44, %s47
      %p53 = scmp.eq.s32.totalorder %s22, 0
      %p54 = por %p52, %p53
      %p55 = scmp.ne.s32.totalorder %s44, %s47
      %p56 = scmp.eq.s32.totalorder %s27, 5
      %p57 = por %p55, %p56
      %p58 = scmp.ne.s32.totalorder %s47, %s48
      %p59 = scmp.eq.s32.totalorder %s27, 0
      %p60 = por %p58, %p59
      %p61 = scmp.ne.s32.totalorder %s47, %s48
      %p62 = scmp.eq.s32.totalorder %s28, 5
      %p63 = por %p61, %p62
      %p65 = scmp.ne.s32.totalorder %s48, %s64
      %p66 = scmp.eq.s32.totalorder %s28, 0
      %p67 = por %p65, %p66
      %s68 = ssub.s32 %s30, %s37
      %p69 = scmp.eq.s32.totalorder %s68, 0
      %s71 = sadd.s32 %s70, 1
      %s72 = scalar_select %p69, %s70, %s71
      %p75 = pneg %p69
      %p76 = scmp.eq.s32.totalorder %s22, 5
      %p77 = por %p75, %p76
      %p78 = scmp.ne.s32.totalorder %s70, %s73
      %p79 = scmp.eq.s32.totalorder %s22, 0
      %p80 = por %p78, %p79
      %p81 = scmp.ne.s32.totalorder %s70, %s73
      %p82 = scmp.eq.s32.totalorder %s27, 5
      %p83 = por %p81, %p82
      %p84 = scmp.ne.s32.totalorder %s73, %s74
      %p85 = scmp.eq.s32.totalorder %s27, 0
      %p86 = por %p84, %p85
      %p87 = scmp.ne.s32.totalorder %s73, %s74
      %p88 = scmp.eq.s32.totalorder %s28, 5
      %p89 = por %p87, %p88
      %p91 = scmp.ne.s32.totalorder %s74, %s90
      %p92 = scmp.eq.s32.totalorder %s28, 0
      %p93 = por %p91, %p92
      %s94 = ssub.s32 %s30, %s37
      %p95 = scmp.eq.s32.totalorder %s94, 0
      %s97 = sadd.s32 %s96, 1
      %s98 = scalar_select %p95, %s96, %s97
      %p101 = pneg %p95
      %p102 = scmp.eq.s32.totalorder %s22, 5
      %p103 = por %p101, %p102
      %p104 = scmp.ne.s32.totalorder %s96, %s99
      %p105 = scmp.eq.s32.totalorder %s22, 0
      %p106 = por %p104, %p105
      %p107 = scmp.ne.s32.totalorder %s96, %s99
      %p108 = scmp.eq.s32.totalorder %s27, 5
      %p109 = por %p107, %p108
      %p110 = scmp.ne.s32.totalorder %s99, %s100
      %p111 = scmp.eq.s32.totalorder %s27, 0
      %p112 = por %p110, %p111
      %p113 = scmp.ne.s32.totalorder %s99, %s100
      %p114 = scmp.eq.s32.totalorder %s28, 5
      %p115 = por %p113, %p114
      %p117 = scmp.ne.s32.totalorder %s100, %s116
      %p118 = scmp.eq.s32.totalorder %s28, 0
      %p119 = por %p117, %p118
      %s120 = ssub.s32 %s30, %s37
      %p121 = scmp.eq.s32.totalorder %s120, 0
      %s123 = sadd.s32 %s122, 1
      %s124 = scalar_select %p121, %s122, %s123
      %p127 = pneg %p121
      %p128 = scmp.eq.s32.totalorder %s22, 5
      %p129 = por %p127, %p128
      %p130 = scmp.ne.s32.totalorder %s122, %s125
      %p131 = scmp.eq.s32.totalorder %s22, 0
      %p132 = por %p130, %p131
      %p133 = scmp.ne.s32.totalorder %s122, %s125
      %p134 = scmp.eq.s32.totalorder %s27, 5
      %p135 = por %p133, %p134
      %p136 = scmp.ne.s32.totalorder %s125, %s126
      %p137 = scmp.eq.s32.totalorder %s27, 0
      %p138 = por %p136, %p137
      %p139 = scmp.ne.s32.totalorder %s125, %s126
      %p140 = scmp.eq.s32.totalorder %s28, 5
      %p141 = por %p139, %p140
      %p143 = scmp.ne.s32.totalorder %s126, %s142
      %p144 = scmp.eq.s32.totalorder %s28, 0
      %p145 = por %p143, %p144
      %s146 = ssub.s32 %s30, %s37
      %p147 = scmp.eq.s32.totalorder %s146, 0
      %s149 = sadd.s32 %s148, 1
      %s150 = scalar_select %p147, %s148, %s149
      %p153 = pneg %p147
      %p154 = scmp.eq.s32.totalorder %s22, 5
      %p155 = por %p153, %p154
      %p156 = scmp.ne.s32.totalorder %s148, %s151
      %p157 = scmp.eq.s32.totalorder %s22, 0
      %p158 = por %p156, %p157
      %p159 = scmp.ne.s32.totalorder %s148, %s151
      %p160 = scmp.eq.s32.totalorder %s27, 5
      %p161 = por %p159, %p160
      %p162 = scmp.ne.s32.totalorder %s151, %s152
      %p163 = scmp.eq.s32.totalorder %s27, 0
      %p164 = por %p162, %p163
      %p165 = scmp.ne.s32.totalorder %s151, %s152
      %p166 = scmp.eq.s32.totalorder %s28, 5
      %p167 = por %p165, %p166
      %p169 = scmp.ne.s32.totalorder %s152, %s168
      %p170 = scmp.eq.s32.totalorder %s28, 0
      %p171 = por %p169, %p170
      %s172 = ssub.s32 %s30, %s37
      %p173 = scmp.eq.s32.totalorder %s172, 0
      %s175 = sadd.s32 %s174, 1
      %s176 = scalar_select %p173, %s174, %s175
      %p179 = pneg %p173
      %p180 = scmp.eq.s32.totalorder %s22, 5
      %p181 = por %p179, %p180
      %p182 = scmp.ne.s32.totalorder %s174, %s177
      %p183 = scmp.eq.s32.totalorder %s22, 0
      %p184 = por %p182, %p183
      %p185 = scmp.ne.s32.totalorder %s174, %s177
      %p186 = scmp.eq.s32.totalorder %s27, 5
      %p187 = por %p185, %p186
      %p188 = scmp.ne.s32.totalorder %s177, %s178
      %p189 = scmp.eq.s32.totalorder %s27, 0
      %p190 = por %p188, %p189
      %p191 = scmp.ne.s32.totalorder %s177, %s178
      %p192 = scmp.eq.s32.totalorder %s28, 5
      %p193 = por %p191, %p192
      %p195 = scmp.ne.s32.totalorder %s178, %s194
      %p196 = scmp.eq.s32.totalorder %s28, 0
      %p197 = por %p195, %p196
      %s198 = ssub.s32 %s30, %s37
      %p199 = scmp.eq.s32.totalorder %s198, 0
      %s201 = sadd.s32 %s200, 1
      %s202 = scalar_select %p199, %s200, %s201
      %p205 = pneg %p199
      %p206 = scmp.eq.s32.totalorder %s22, 5
      %p207 = por %p205, %p206
      %p208 = scmp.ne.s32.totalorder %s200, %s203
      %p209 = scmp.eq.s32.totalorder %s22, 0
      %p210 = por %p208, %p209
      %p211 = scmp.ne.s32.totalorder %s200, %s203
      %p212 = scmp.eq.s32.totalorder %s27, 5
      %p213 = por %p211, %p212
      %p214 = scmp.ne.s32.totalorder %s203, %s204
      %p215 = scmp.eq.s32.totalorder %s27, 0
      %p216 = por %p214, %p215
      %p217 = scmp.ne.s32.totalorder %s203, %s204
      %p218 = scmp.eq.s32.totalorder %s28, 5
      %p219 = por %p217, %p218
      %p221 = scmp.ne.s32.totalorder %s204, %s220
      %p222 = scmp.eq.s32.totalorder %s28, 0
      %p223 = por %p221, %p222
      %s224 = ssub.s32 %s30, %s37
      %p225 = scmp.eq.s32.totalorder %s224, 0
      %s227 = sadd.s32 %s226, 1
      %s228 = scalar_select %p225, %s226, %s227
      %p231 = pneg %p225
      %p232 = scmp.eq.s32.totalorder %s22, 5
      %p233 = por %p231, %p232
      %p234 = scmp.ne.s32.totalorder %s226, %s229
      %p235 = scmp.eq.s32.totalorder %s22, 0
      %p236 = por %p234, %p235
      %p237 = scmp.ne.s32.totalorder %s226, %s229
      %p238 = scmp.eq.s32.totalorder %s27, 5
      %p239 = por %p237, %p238
      %p240 = scmp.ne.s32.totalorder %s229, %s230
      %p241 = scmp.eq.s32.totalorder %s27, 0
      %p242 = por %p240, %p241
      %p243 = scmp.ne.s32.totalorder %s229, %s230
      %p244 = scmp.eq.s32.totalorder %s28, 5
      %p245 = por %p243, %p244
      %p247 = scmp.ne.s32.totalorder %s230, %s246
      %p248 = scmp.eq.s32.totalorder %s28, 0
      %p249 = por %p247, %p248
      %s250 = ssub.s32 %s30, %s37
      %p251 = scmp.eq.s32.totalorder %s250, 0
      %s253 = sadd.s32 %s252, 1
      %s254 = scalar_select %p251, %s252, %s253
      %p257 = pneg %p251
      %p258 = scmp.eq.s32.totalorder %s22, 5
      %p259 = por %p257, %p258
      %p260 = scmp.ne.s32.totalorder %s252, %s255
      %p261 = scmp.eq.s32.totalorder %s22, 0
      %p262 = por %p260, %p261
      %p263 = scmp.ne.s32.totalorder %s252, %s255
      %p264 = scmp.eq.s32.totalorder %s27, 5
      %p265 = por %p263, %p264
      %p266 = scmp.ne.s32.totalorder %s255, %s256
      %p267 = scmp.eq.s32.totalorder %s27, 0
      %p268 = por %p266, %p267
      %p269 = scmp.ne.s32.totalorder %s255, %s256
      %p270 = scmp.eq.s32.totalorder %s28, 5
      %p271 = por %p269, %p270
      %p273 = scmp.ne.s32.totalorder %s256, %s272
      %p274 = scmp.eq.s32.totalorder %s28, 0
      %p275 = por %p273, %p274
      %s276 = ssub.s32 %s30, %s37
      %p277 = scmp.eq.s32.totalorder %s276, 0
      %s279 = sadd.s32 %s278, 1
      %s280 = scalar_select %p277, %s278, %s279
      %p283 = pneg %p277
      %p284 = scmp.eq.s32.totalorder %s22, 5
      %p285 = por %p283, %p284
      %p286 = scmp.ne.s32.totalorder %s278, %s281
      %p287 = scmp.eq.s32.totalorder %s22, 0
      %p288 = por %p286, %p287
      %p289 = scmp.ne.s32.totalorder %s278, %s281
      %p290 = scmp.eq.s32.totalorder %s27, 5
      %p291 = por %p289, %p290
      %p292 = scmp.ne.s32.totalorder %s281, %s282
      %p293 = scmp.eq.s32.totalorder %s27, 0
      %p294 = por %p292, %p293
      %p295 = scmp.ne.s32.totalorder %s281, %s282
      %p296 = scmp.eq.s32.totalorder %s28, 5
      %p297 = por %p295, %p296
      %p299 = scmp.ne.s32.totalorder %s282, %s298
      %p300 = scmp.eq.s32.totalorder %s28, 0
      %p301 = por %p299, %p300
      %s302 = ssub.s32 %s30, %s37
      %p303 = scmp.eq.s32.totalorder %s302, 0
      %s305 = sadd.s32 %s304, 1
      %s306 = scalar_select %p303, %s304, %s305
      %p309 = pneg %p303
      %p310 = scmp.eq.s32.totalorder %s22, 5
      %p311 = por %p309, %p310
      %p312 = scmp.ne.s32.totalorder %s304, %s307
      %p313 = scmp.eq.s32.totalorder %s22, 0
      %p314 = por %p312, %p313
      %p315 = scmp.ne.s32.totalorder %s304, %s307
      %p316 = scmp.eq.s32.totalorder %s27, 5
      %p317 = por %p315, %p316
      %p318 = scmp.ne.s32.totalorder %s307, %s308
      %p319 = scmp.eq.s32.totalorder %s27, 0
      %p320 = por %p318, %p319
      %p321 = scmp.ne.s32.totalorder %s307, %s308
      %p322 = scmp.eq.s32.totalorder %s28, 5
      %p323 = por %p321, %p322
      %p325 = scmp.ne.s32.totalorder %s308, %s324
      %p326 = scmp.eq.s32.totalorder %s28, 0
      %p327 = por %p325, %p326
      %s328 = ssub.s32 %s30, %s37
      %p329 = scmp.eq.s32.totalorder %s328, 0
      %s331 = sadd.s32 %s330, 1
      %s332 = scalar_select %p329, %s330, %s331
      %p335 = pneg %p329
      %p336 = scmp.eq.s32.totalorder %s22, 5
      %p337 = por %p335, %p336
      %p338 = scmp.ne.s32.totalorder %s330, %s333
      %p339 = scmp.eq.s32.totalorder %s22, 0
      %p340 = por %p338, %p339
      %p341 = scmp.ne.s32.totalorder %s330, %s333
      %p342 = scmp.eq.s32.totalorder %s27, 5
      %p343 = por %p341, %p342
      %p344 = scmp.ne.s32.totalorder %s333, %s334
      %p345 = scmp.eq.s32.totalorder %s27, 0
      %p346 = por %p344, %p345
      %p347 = scmp.ne.s32.totalorder %s333, %s334
      %p348 = scmp.eq.s32.totalorder %s28, 5
      %p349 = por %p347, %p348
      %p351 = scmp.ne.s32.totalorder %s334, %s350
      %p352 = scmp.eq.s32.totalorder %s28, 0
      %p353 = por %p351, %p352
      %s354 = ssub.s32 %s30, %s37
      %p355 = scmp.eq.s32.totalorder %s354, 0
      %s357 = sadd.s32 %s356, 1
      %s358 = scalar_select %p355, %s356, %s357
      %p361 = pneg %p355
      %p362 = scmp.eq.s32.totalorder %s22, 5
      %p363 = por %p361, %p362
      %p364 = scmp.ne.s32.totalorder %s356, %s359
      %p365 = scmp.eq.s32.totalorder %s22, 0
      %p366 = por %p364, %p365
      %p367 = scmp.ne.s32.totalorder %s356, %s359
      %p368 = scmp.eq.s32.totalorder %s27, 5
      %p369 = por %p367, %p368
      %p370 = scmp.ne.s32.totalorder %s359, %s360
      %p371 = scmp.eq.s32.totalorder %s27, 0
      %p372 = por %p370, %p371
      %p373 = scmp.ne.s32.totalorder %s359, %s360
      %p374 = scmp.eq.s32.totalorder %s28, 5
      %p375 = por %p373, %p374
      %p377 = scmp.ne.s32.totalorder %s360, %s376
      %p378 = scmp.eq.s32.totalorder %s28, 0
      %p379 = por %p377, %p378
      %s380 = ssub.s32 %s29, %s41
      %p381 = scmp.eq.s32.totalorder %s380, 0
      %s383 = sadd.s32 %s382, 1
      %s384 = scalar_select %p381, %s382, %s383
      %p387 = pneg %p381
      %p388 = scmp.eq.s32.totalorder %s22, 5
      %p389 = por %p387, %p388
      %p390 = scmp.ne.s32.totalorder %s382, %s385
      %p391 = scmp.eq.s32.totalorder %s22, 0
      %p392 = por %p390, %p391
      %p393 = scmp.ne.s32.totalorder %s382, %s385
      %p394 = scmp.eq.s32.totalorder %s27, 5
      %p395 = por %p393, %p394
      %p396 = scmp.ne.s32.totalorder %s385, %s386
      %p397 = scmp.eq.s32.totalorder %s27, 0
      %p398 = por %p396, %p397
      %p399 = scmp.ne.s32.totalorder %s385, %s386
      %p400 = scmp.eq.s32.totalorder %s28, 5
      %p401 = por %p399, %p400
      %p403 = scmp.ne.s32.totalorder %s386, %s402
      %p404 = scmp.eq.s32.totalorder %s28, 0
      %p405 = por %p403, %p404
      %p406 = scmp.le.s32.totalorder 1, %s22
      %p407 = scmp.lt.s32.totalorder %s22, 7
      %p408 = pnand %p406, %p407
      %p409 = pneg %p408
      // Predicated region
      $region9: #{transformer_encoder_forward.1} parent=5 // pred_check
        _
      $region10: #{transformer_encoder_forward.1} parent=5 // pred_check_branch
        %411 = sbr.rel (%p408) target = $region12
      $region11: #{transformer_encoder_forward.1} parent=5 // pred_region
        %s412 = ssub.s32 %s22, 1
      $region12: #{transformer_encoder_forward.1} parent=5 // pred_fallthru
        _
      %p413 = scmp.lt.s32.totalorder %s22, 6
      // Predicated region
      $region13: #{transformer_encoder_forward.1} parent=5 // pred_check
        %p414 = pneg %p413
      $region14: #{transformer_encoder_forward.1} parent=5 // pred_check_branch
        %416 = sbr.rel (%p414) target = $region16
      $region15: #{transformer_encoder_forward.1} parent=5 // pred_region
        // Predicated region
        $region17: #{transformer_encoder_forward.1} parent=15 // pred_check
          %p417 = pneg %p54
        $region18: #{transformer_encoder_forward.1} parent=15 // pred_check_branch
          %419 = sbr.rel (%p417) target = $region20
        $region19: #{transformer_encoder_forward.1} parent=15 // pred_region
          %p420 = scmp.lt.s32.totalorder %s29, 1
          %s421 = scalar_select %p420, %s29, 1
          %s422 = smul.addr %s421, 8
          %s423 = scalar_lea.vmem %s0, %s422
        $region20: #{transformer_encoder_forward.1} parent=15 // pred_fallthru
          _
        // Predicated region
        $region21: #{transformer_encoder_forward.1} parent=15 // pred_check
          %p424 = pneg %p80
        $region22: #{transformer_encoder_forward.1} parent=15 // pred_check_branch
          %426 = sbr.rel (%p424) target = $region24
        $region23: #{transformer_encoder_forward.1} parent=15 // pred_region
          %p427 = scmp.lt.s32.totalorder %s30, 2
          %s428 = scalar_select %p427, %s30, 2
          %s429 = smul.addr %s428, 48
          %s430 = smul.addr %s429, 8
          %s431 = scalar_lea.vmem %s1, %s430
        $region24: #{transformer_encoder_forward.1} parent=15 // pred_fallthru
          _
        // Predicated region
        $region25: #{transformer_encoder_forward.1} parent=15 // pred_check
          %p432 = pneg %p106
        $region26: #{transformer_encoder_forward.1} parent=15 // pred_check_branch
          %434 = sbr.rel (%p432) target = $region28
        $region27: #{transformer_encoder_forward.1} parent=15 // pred_region
          %p435 = scmp.lt.s32.totalorder %s30, 2
          %s436 = scalar_select %p435, %s30, 2
          %s437 = smul.addr %s436, 3
          %s438 = scalar_lea.vmem %s2, %s437
        $region28: #{transformer_encoder_forward.1} parent=15 // pred_fallthru
          _
        // Predicated region
        $region29: #{transformer_encoder_forward.1} parent=15 // pred_check
          %p439 = pneg %p132
        $region30: #{transformer_encoder_forward.1} parent=15 // pred_check_branch
          %441 = sbr.rel (%p439) target = $region32
        $region31: #{transformer_encoder_forward.1} parent=15 // pred_region
          %p442 = scmp.lt.s32.totalorder %s30, 2
          %s443 = scalar_select %p442, %s30, 2
          %s444 = smul.addr %s443, 16
          %s445 = smul.addr %s444, 8
          %s446 = scalar_lea.vmem %s3, %s445
        $region32: #{transformer_encoder_forward.1} parent=15 // pred_fallthru
          _
        // Predicated region
        $region33: #{transformer_encoder_forward.1} parent=15 // pred_check
          %p447 = pneg %p158
        $region34: #{transformer_encoder_forward.1} parent=15 // pred_check_branch
          %449 = sbr.rel (%p447) target = $region36
        $region35: #{transformer_encoder_forward.1} parent=15 // pred_region
          %p450 = scmp.lt.s32.totalorder %s30, 2
          %s451 = scalar_select %p450, %s30, 2
          %s452 = scalar_lea.vmem %s4, %s451
        $region36: #{transformer_encoder_forward.1} parent=15 // pred_fallthru
          _
        // Predicated region
        $region37: #{transformer_encoder_forward.1} parent=15 // pred_check
          %p453 = pneg %p184
        $region38: #{transformer_encoder_forward.1} parent=15 // pred_check_branch
          %455 = sbr.rel (%p453) target = $region40
        $region39: #{transformer_encoder_forward.1} parent=15 // pred_region
          %p456 = scmp.lt.s32.totalorder %s30, 2
          %s457 = scalar_select %p456, %s30, 2
          %s458 = scalar_lea.vmem %s5, %s457
        $region40: #{transformer_encoder_forward.1} parent=15 // pred_fallthru
          _
        // Predicated region
        $region41: #{transformer_encoder_forward.1} parent=15 // pred_check
          %p459 = pneg %p210
        $region42: #{transformer_encoder_forward.1} parent=15 // pred_check_branch
          %461 = sbr.rel (%p459) target = $region44
        $region43: #{transformer_encoder_forward.1} parent=15 // pred_region
          %p462 = scmp.lt.s32.totalorder %s30, 2
          %s463 = scalar_select %p462, %s30, 2
          %s464 = scalar_lea.vmem %s6, %s463
        $region44: #{transformer_encoder_forward.1} parent=15 // pred_fallthru
          _
        // Predicated region
        $region45: #{transformer_encoder_forward.1} parent=15 // pred_check
          %p465 = pneg %p236
        $region46: #{transformer_encoder_forward.1} parent=15 // pred_check_branch
          %467 = sbr.rel (%p465) target = $region48
        $region47: #{transformer_encoder_forward.1} parent=15 // pred_region
          %p468 = scmp.lt.s32.totalorder %s30, 2
          %s469 = scalar_select %p468, %s30, 2
          %s470 = smul.addr %s469, 32
          %s471 = smul.addr %s470, 8
          %s472 = scalar_lea.vmem %s7, %s471
        $region48: #{transformer_encoder_forward.1} parent=15 // pred_fallthru
          _
        // Predicated region
        $region49: #{transformer_encoder_forward.1} parent=15 // pred_check
          %p473 = pneg %p262
        $region50: #{transformer_encoder_forward.1} parent=15 // pred_check_branch
          %475 = sbr.rel (%p473) target = $region52
        $region51: #{transformer_encoder_forward.1} parent=15 // pred_region
          %p476 = scmp.lt.s32.totalorder %s30, 2
          %s477 = scalar_select %p476, %s30, 2
          %s478 = smul.addr %s477, 2
          %s479 = scalar_lea.vmem %s8, %s478
        $region52: #{transformer_encoder_forward.1} parent=15 // pred_fallthru
          _
        // Predicated region
        $region53: #{transformer_encoder_forward.1} parent=15 // pred_check
          %p480 = pneg %p288
        $region54: #{transformer_encoder_forward.1} parent=15 // pred_check_branch
          %482 = sbr.rel (%p480) target = $region56
        $region55: #{transformer_encoder_forward.1} parent=15 // pred_region
          %p483 = scmp.lt.s32.totalorder %s30, 2
          %s484 = scalar_select %p483, %s30, 2
          %s485 = smul.addr %s484, 32
          %s486 = smul.addr %s485, 8
          %s487 = scalar_lea.vmem %s9, %s486
        $region56: #{transformer_encoder_forward.1} parent=15 // pred_fallthru
          _
        // Predicated region
        $region57: #{transformer_encoder_forward.1} parent=15 // pred_check
          %p488 = pneg %p314
        $region58: #{transformer_encoder_forward.1} parent=15 // pred_check_branch
          %490 = sbr.rel (%p488) target = $region60
        $region59: #{transformer_encoder_forward.1} parent=15 // pred_region
          %p491 = scmp.lt.s32.totalorder %s30, 2
          %s492 = scalar_select %p491, %s30, 2
          %s493 = scalar_lea.vmem %s10, %s492
        $region60: #{transformer_encoder_forward.1} parent=15 // pred_fallthru
          _
        // Predicated region
        $region61: #{transformer_encoder_forward.1} parent=15 // pred_check
          %p494 = pneg %p340
        $region62: #{transformer_encoder_forward.1} parent=15 // pred_check_branch
          %496 = sbr.rel (%p494) target = $region64
        $region63: #{transformer_encoder_forward.1} parent=15 // pred_region
          %p497 = scmp.lt.s32.totalorder %s30, 2
          %s498 = scalar_select %p497, %s30, 2
          %s499 = scalar_lea.vmem %s11, %s498
        $region64: #{transformer_encoder_forward.1} parent=15 // pred_fallthru
          _
        // Predicated region
        $region65: #{transformer_encoder_forward.1} parent=15 // pred_check
          %p500 = pneg %p366
        $region66: #{transformer_encoder_forward.1} parent=15 // pred_check_branch
          %502 = sbr.rel (%p500) target = $region68
        $region67: #{transformer_encoder_forward.1} parent=15 // pred_region
          %p503 = scmp.lt.s32.totalorder %s30, 2
          %s504 = scalar_select %p503, %s30, 2
          %s505 = scalar_lea.vmem %s12, %s504
        $region68: #{transformer_encoder_forward.1} parent=15 // pred_fallthru
          _
      $region16: #{transformer_encoder_forward.1} parent=5 // pred_fallthru
        _
      %p506 = scmp.le.s32.totalorder 1, %s22
      %p507 = scmp.lt.s32.totalorder %s22, 7
      %p508 = pnand %p506, %p507
      %p509 = pneg %p508
      // Predicated region
      $region69: #{transformer_encoder_forward.1} parent=5 // pred_check
        _
      $region70: #{transformer_encoder_forward.1} parent=5 // pred_check_branch
        %511 = sbr.rel (%p508) target = $region72
      $region71: #{transformer_encoder_forward.1} parent=5 // pred_region
        %s512 = ssub.s32 %s22, 1
        %p513 = scmp.lt.s32.totalorder %s31, 1
        %s514 = scalar_select %p513, %s31, 1
        %s515 = smul.addr %s514, 8
        %s516 = scalar_lea.vmem %s0, %s515
        %p517 = pneg %p60
        %p518 = pneg %p57
        %p519 = scmp.lt.s32.totalorder %s32, 2
        %s520 = scalar_select %p519, %s32, 2
        %s521 = smul.addr %s520, 48
        %s522 = smul.addr %s521, 8
        %s523 = scalar_lea.vmem %s1, %s522
        %p524 = pneg %p86
        %p525 = pneg %p83
        %p526 = scmp.lt.s32.totalorder %s32, 2
        %s527 = scalar_select %p526, %s32, 2
        %s528 = smul.addr %s527, 3
        %s529 = scalar_lea.vmem %s2, %s528
        %p530 = pneg %p112
        %p531 = pneg %p109
        %p532 = scmp.lt.s32.totalorder %s32, 2
        %s533 = scalar_select %p532, %s32, 2
        %s534 = smul.addr %s533, 16
        %s535 = smul.addr %s534, 8
        %s536 = scalar_lea.vmem %s3, %s535
        %p537 = pneg %p138
        %p538 = pneg %p135
        %p539 = scmp.lt.s32.totalorder %s32, 2
        %s540 = scalar_select %p539, %s32, 2
        %s541 = scalar_lea.vmem %s4, %s540
        %p542 = pneg %p164
        %p543 = pneg %p161
        %p544 = scmp.lt.s32.totalorder %s32, 2
        %s545 = scalar_select %p544, %s32, 2
        %s546 = scalar_lea.vmem %s5, %s545
        %p547 = pneg %p190
        %p548 = pneg %p187
        %p549 = scmp.lt.s32.totalorder %s32, 2
        %s550 = scalar_select %p549, %s32, 2
        %s551 = scalar_lea.vmem %s6, %s550
        %p552 = pneg %p216
        %p553 = pneg %p213
        %p554 = scmp.lt.s32.totalorder %s32, 2
        %s555 = scalar_select %p554, %s32, 2
        %s556 = smul.addr %s555, 32
        %s557 = smul.addr %s556, 8
        %s558 = scalar_lea.vmem %s7, %s557
        %p559 = pneg %p242
        %p560 = pneg %p239
        %p561 = scmp.lt.s32.totalorder %s32, 2
        %s562 = scalar_select %p561, %s32, 2
        %s563 = smul.addr %s562, 2
        %s564 = scalar_lea.vmem %s8, %s563
        %p565 = pneg %p268
        %p566 = pneg %p265
        %p567 = scmp.lt.s32.totalorder %s32, 2
        %s568 = scalar_select %p567, %s32, 2
        %s569 = smul.addr %s568, 32
        %s570 = smul.addr %s569, 8
        %s571 = scalar_lea.vmem %s9, %s570
        %p572 = pneg %p294
        %p573 = pneg %p291
        %p574 = scmp.lt.s32.totalorder %s32, 2
        %s575 = scalar_select %p574, %s32, 2
        %s576 = scalar_lea.vmem %s10, %s575
        %p577 = pneg %p320
        %p578 = pneg %p317
        %p579 = scmp.lt.s32.totalorder %s32, 2
        %s580 = scalar_select %p579, %s32, 2
        %s581 = scalar_lea.vmem %s11, %s580
        %p582 = pneg %p346
        %p583 = pneg %p343
        %p584 = scmp.lt.s32.totalorder %s32, 2
        %s585 = scalar_select %p584, %s32, 2
        %s586 = scalar_lea.vmem %s12, %s585
        %p587 = pneg %p372
        %p588 = pneg %p369
        %p589 = pneg %p398
        %p590 = pneg %p395
        %s591 = sand.u32 %s385, 1
        %s592 = scalar_lea.sflag [#allocation4], %s591
        %s593 = sand.u32 %s385, 1
        %s594 = smul.addr %s593, 8
        %s595 = scalar_lea.vmem [#allocation3], %s594
        %p596 = scmp.lt.s32.totalorder %s31, 1
        %s597 = scalar_select %p596, %s31, 1
        %s598 = smul.addr %s597, 8
        %s599 = scalar_lea.vmem %s0, %s598
        %p600 = scmp.lt.s32.totalorder %s32, 2
        %s601 = scalar_select %p600, %s32, 2
        %s602 = smul.addr %s601, 48
        %s603 = smul.addr %s602, 8
        %s604 = scalar_lea.vmem %s1, %s603
        %p605 = scmp.lt.s32.totalorder %s32, 2
        %s606 = scalar_select %p605, %s32, 2
        %s607 = smul.addr %s606, 3
        %s608 = scalar_lea.vmem %s2, %s607
        %p609 = scmp.lt.s32.totalorder %s32, 2
        %s610 = scalar_select %p609, %s32, 2
        %s611 = smul.addr %s610, 16
        %s612 = smul.addr %s611, 8
        %s613 = scalar_lea.vmem %s3, %s612
        %p614 = scmp.lt.s32.totalorder %s32, 2
        %s615 = scalar_select %p614, %s32, 2
        %s616 = scalar_lea.vmem %s4, %s615
        %p617 = scmp.lt.s32.totalorder %s32, 2
        %s618 = scalar_select %p617, %s32, 2
        %s619 = scalar_lea.vmem %s5, %s618
        %p620 = scmp.lt.s32.totalorder %s32, 2
        %s621 = scalar_select %p620, %s32, 2
        %s622 = scalar_lea.vmem %s6, %s621
        %p623 = scmp.lt.s32.totalorder %s32, 2
        %s624 = scalar_select %p623, %s32, 2
        %s625 = smul.addr %s624, 32
        %s626 = smul.addr %s625, 8
        %s627 = scalar_lea.vmem %s7, %s626
        %p628 = scmp.lt.s32.totalorder %s32, 2
        %s629 = scalar_select %p628, %s32, 2
        %s630 = smul.addr %s629, 2
        %s631 = scalar_lea.vmem %s8, %s630
        %p632 = scmp.lt.s32.totalorder %s32, 2
        %s633 = scalar_select %p632, %s32, 2
        %s634 = smul.addr %s633, 32
        %s635 = smul.addr %s634, 8
        %s636 = scalar_lea.vmem %s9, %s635
        %p637 = scmp.lt.s32.totalorder %s32, 2
        %s638 = scalar_select %p637, %s32, 2
        %s639 = scalar_lea.vmem %s10, %s638
        %p640 = scmp.lt.s32.totalorder %s32, 2
        %s641 = scalar_select %p640, %s32, 2
        %s642 = scalar_lea.vmem %s11, %s641
        %p643 = scmp.lt.s32.totalorder %s32, 2
        %s644 = scalar_select %p643, %s32, 2
        %s645 = scalar_lea.vmem %s12, %s644
        %p646 = scmp.eq.s32.totalorder %s32, 0
        // Predicated region
        $region73: #{transformer_encoder_forward.1} parent=71 // pred_check
          %p647 = pneg %p646
        $region74: #{transformer_encoder_forward.1} parent=71 // pred_check_branch
          %649 = sbr.rel (%p647) target = $region76
        $region75: #{transformer_encoder_forward.1} parent=71 // pred_region
          %v650 = vld [vmem:[%s599] sm:$0xff]
          %651 = vst [vmem:[%s595] sm:$0xff] %v650
        $region76: #{transformer_encoder_forward.1} parent=71 // pred_fallthru
          _
        %v652 = vld [vmem:[%s595] sm:$0xff]
        %v653 = vld [vmem:[%s604] sm:$0xff]
        %v654 = vld [vmem:[%s604 + $0x8] sm:$0xff]
        %v655 = vld [vmem:[%s604 + $0x10] sm:$0xff]
        %v656 = vld [vmem:[%s604 + $0x18] sm:$0xff]
        %v657 = vld [vmem:[%s604 + $0x20] sm:$0xff]
        %v658 = vld [vmem:[%s604 + $0x28] sm:$0xff]
        %v659 = vld [vmem:[%s604 + $0x30] sm:$0xff]
        %v660 = vld [vmem:[%s604 + $0x38] sm:$0xff]
        %v661 = vld [vmem:[%s604 + $0x40] sm:$0xff]
        %v662 = vld [vmem:[%s604 + $0x48] sm:$0xff]
        %v663 = vld [vmem:[%s604 + $0x50] sm:$0xff]
        %v664 = vld [vmem:[%s604 + $0x58] sm:$0xff]
        %v665 = vld [vmem:[%s604 + $0x60] sm:$0xff]
        %v666 = vld [vmem:[%s604 + $0x68] sm:$0xff]
        %v667 = vld [vmem:[%s604 + $0x70] sm:$0xff]
        %v668 = vld [vmem:[%s604 + $0x78] sm:$0xff]
        %v669 = vld [vmem:[%s604 + $0x80] sm:$0xff]
        %v670 = vld [vmem:[%s604 + $0x88] sm:$0xff]
        %v671 = vld [vmem:[%s604 + $0x90] sm:$0xff]
        %v672 = vld [vmem:[%s604 + $0x98] sm:$0xff]
        %v673 = vld [vmem:[%s604 + $0xa0] sm:$0xff]
        %v674 = vld [vmem:[%s604 + $0xa8] sm:$0xff]
        %v675 = vld [vmem:[%s604 + $0xb0] sm:$0xff]
        %v676 = vld [vmem:[%s604 + $0xb8] sm:$0xff]
        %v677 = vld [vmem:[%s604 + $0xc0] sm:$0xff]
        %v678 = vld [vmem:[%s604 + $0xc8] sm:$0xff]
        %v679 = vld [vmem:[%s604 + $0xd0] sm:$0xff]
        %v680 = vld [vmem:[%s604 + $0xd8] sm:$0xff]
        %v681 = vld [vmem:[%s604 + $0xe0] sm:$0xff]
        %v682 = vld [vmem:[%s604 + $0xe8] sm:$0xff]
        %v683 = vld [vmem:[%s604 + $0xf0] sm:$0xff]
        %v684 = vld [vmem:[%s604 + $0xf8] sm:$0xff]
        %v685 = vld [vmem:[%s604 + $0x100] sm:$0xff]
        %v686 = vld [vmem:[%s604 + $0x108] sm:$0xff]
        %v687 = vld [vmem:[%s604 + $0x110] sm:$0xff]
        %v688 = vld [vmem:[%s604 + $0x118] sm:$0xff]
        %v689 = vld [vmem:[%s604 + $0x120] sm:$0xff]
        %v690 = vld [vmem:[%s604 + $0x128] sm:$0xff]
        %v691 = vld [vmem:[%s604 + $0x130] sm:$0xff]
        %v692 = vld [vmem:[%s604 + $0x138] sm:$0xff]
        %v693 = vld [vmem:[%s604 + $0x140] sm:$0xff]
        %v694 = vld [vmem:[%s604 + $0x148] sm:$0xff]
        %v695 = vld [vmem:[%s604 + $0x150] sm:$0xff]
        %v696 = vld [vmem:[%s604 + $0x158] sm:$0xff]
        %v697 = vld [vmem:[%s604 + $0x160] sm:$0xff]
        %v698 = vld [vmem:[%s604 + $0x168] sm:$0xff]
        %v699 = vld [vmem:[%s604 + $0x170] sm:$0xff]
        %v700 = vld [vmem:[%s604 + $0x178] sm:$0xff]
        %v701 = vld [vmem:[%s608] sm:$0x7]
        %v703 = vperm.slane %v701, 0
        %v704 = vperm.slane %v701, 1
        %v705 = vperm.slane %v701, 2
        %709 = vmatpush.msra.mxu0 %v698
        %710 = vmatpush.msra.mxu0 %v695
        %711 = vmatpush.msra.mxu0 %v692
        %712 = vmatpush.msra.mxu0 %v689
        %713 = vmatpush.msra.mxu0 %v686
        %714 = vmatpush.msra.mxu0 %v683
        %715 = vmatpush.msra.mxu0 %v680
        %716 = vmatpush.msra.mxu0 %v677
        %717 = vmatpush.msra.mxu0 %v674
        %718 = vmatpush.msra.mxu0 %v671
        %719 = vmatpush.msra.mxu0 %v668
        %720 = vmatpush.msra.mxu0 %v665
        %721 = vmatpush.msra.mxu0 %v662
        %722 = vmatpush.msra.mxu0 %v659
        %723 = vmatpush.msra.mxu0 %v656
        %724 = vmatpush.msra.mxu0 %v653
        %725 = vmatmul.f32.gmra.mxu0 %v652
        %v726 = vpop.f32.mrf.mxu0
        %v727 = vadd.f32 %v703, %v726
        %728 = vdwg.mxu0
        %729 = vmatpush.msra.mxu0 %v699
        %730 = vmatpush.msra.mxu0 %v696
        %731 = vmatpush.msra.mxu0 %v693
        %732 = vmatpush.msra.mxu0 %v690
        %733 = vmatpush.msra.mxu0 %v687
        %734 = vmatpush.msra.mxu0 %v684
        %735 = vmatpush.msra.mxu0 %v681
        %736 = vmatpush.msra.mxu0 %v678
        %737 = vmatpush.msra.mxu0 %v675
        %738 = vmatpush.msra.mxu0 %v672
        %739 = vmatpush.msra.mxu0 %v669
        %740 = vmatpush.msra.mxu0 %v666
        %741 = vmatpush.msra.mxu0 %v663
        %742 = vmatpush.msra.mxu0 %v660
        %743 = vmatpush.msra.mxu0 %v657
        %744 = vmatpush.msra.mxu0 %v654
        %745 = vmatmul.f32.gmra.mxu0 %v652
        %v746 = vpop.f32.mrf.mxu0
        %v747 = vadd.f32 %v704, %v746
        %748 = vdwg.mxu0
        %749 = vmatpush.msra.mxu0 %v700
        %750 = vmatpush.msra.mxu0 %v697
        %751 = vmatpush.msra.mxu0 %v694
        %752 = vmatpush.msra.mxu0 %v691
        %753 = vmatpush.msra.mxu0 %v688
        %754 = vmatpush.msra.mxu0 %v685
        %755 = vmatpush.msra.mxu0 %v682
        %756 = vmatpush.msra.mxu0 %v679
        %757 = vmatpush.msra.mxu0 %v676
        %758 = vmatpush.msra.mxu0 %v673
        %759 = vmatpush.msra.mxu0 %v670
        %760 = vmatpush.msra.mxu0 %v667
        %761 = vmatpush.msra.mxu0 %v664
        %762 = vmatpush.msra.mxu0 %v661
        %763 = vmatpush.msra.mxu0 %v658
        %764 = vmatpush.msra.mxu0 %v655
        %765 = vmatmul.f32.gmra.mxu0 %v652
        %v766 = vpop.f32.mrf.mxu0
        %v767 = vadd.f32 %v705, %v766
        %768 = vdwg.mxu0
        %v769 = vmul.f32 %v727, 0.17677669
        %771 = vrot.lane.b32.xlu0 %v727, 96
        %v772 = vpop.permute.xlu0 %771
        %vm773 = vcmask 261120
        %v775 = vsel %vm773, %v769, 0
        %v777 = vsel %vm773, %v772, 0
        %779 = vmatpush.xpose.msra.mxu0 0.0
        %780 = vmatpush.xpose.msra.mxu0 0.0
        %781 = vmatpush.xpose.msra.mxu0 0.0
        %782 = vmatpush.xpose.msra.mxu0 0.0
        %783 = vmatpush.xpose.msra.mxu0 0.0
        %784 = vmatpush.xpose.msra.mxu0 0.0
        %785 = vmatpush.xpose.msra.mxu0 0.0
        %786 = vmatpush.xpose.msra.mxu0 0.0
        %787 = vmatpush.xpose.msra.mxu0 0.0
        %788 = vmatpush.xpose.msra.mxu0 0.0
        %789 = vmatpush.xpose.msra.mxu0 0.0
        %790 = vmatpush.xpose.msra.mxu0 0.0
        %791 = vmatpush.xpose.msra.mxu0 0.0
        %792 = vmatpush.xpose.msra.mxu0 0.0
        %793 = vmatpush.xpose.msra.mxu0 0.0
        %794 = vmatpush.xpose.msra.mxu0 %v777
        %795 = vmatmul.f32.gmra.mxu0 %v775
        %v796 = vpop.f32.mrf.mxu0
        %v797 = vadd.f32 0.0, %v796
        %798 = vdwg.mxu0
        %vm799 = vcmask 64512
        %v800 = vsel %vm799, %v797, -inf
        %801 = vmax.xlane.f32.xlu0 %v800
        %v802 = vpop.xlane.xlu0 %801
        %v803 = vsub.f32 %v797, %v802
        %v804 = vmul.f32 %v803, 1.442695
        %v805 = vpow.pop %v804
        %v806 = vsel %vm799, %v805, 0.0
        %807 = vadd.xlane.f32.xlu0 %v806
        %v808 = vpop.xlane.xlu0 %807
        %v809 = vrcp.pop %v808
        %v810 = vmul.f32 %v805, %v809
        %811 = vrot.lane.b32.xlu0 %v727, 64
        %v812 = vpop.permute.xlu0 %811
        %v815 = vsel %vm799, %v810, 0
        %817 = vmatpush.msra.mxu0 0.0
        %818 = vmatpush.msra.mxu0 0.0
        %819 = vmatpush.msra.mxu0 0.0
        %820 = vmatpush.msra.mxu0 0.0
        %821 = vmatpush.msra.mxu0 0.0
        %822 = vmatpush.msra.mxu0 0.0
        %823 = vmatpush.msra.mxu0 0.0
        %824 = vmatpush.msra.mxu0 0.0
        %825 = vmatpush.msra.mxu0 0.0
        %826 = vmatpush.msra.mxu0 0.0
        %827 = vmatpush.msra.mxu0 0.0
        %828 = vmatpush.msra.mxu0 0.0
        %829 = vmatpush.msra.mxu0 0.0
        %830 = vmatpush.msra.mxu0 0.0
        %831 = vmatpush.msra.mxu0 0.0
        %832 = vmatpush.msra.mxu0 %v812
        %833 = vmatmul.f32.gmra.mxu0 %v815
        %v834 = vpop.f32.mrf.mxu0
        %v835 = vadd.f32 0.0, %v834
        %836 = vdwg.mxu0
        %vm837 = vcmask 253952
        %838 = vst.msk [vmem:[#allocation2] sm:$0x1] %vm837, %v835
        %840 = vrot.lane.b32.xlu0 %v835, 32
        %v841 = vpop.permute.xlu0 %840
        %vm843 = vcmask 517377
        %844 = vst.msk [vmem:[#allocation2 - $0x1] sm:$0x2] %vm843, %v841
        %845 = vrot.lane.b32.xlu0 %v835, 64
        %v846 = vpop.permute.xlu0 %845
        %vm848 = vcmask 780802
        %849 = vst.msk [vmem:[#allocation2 - $0x2] sm:$0x4] %vm848, %v846
        %850 = vrot.lane.b32.xlu0 %v835, 96
        %v851 = vpop.permute.xlu0 %850
        %vm853 = vcmask 1044227
        %854 = vst.msk [vmem:[#allocation2 - $0x3] sm:$0x8] %vm853, %v851
        %vm855 = vcmask 258052
        %856 = vst.msk [vmem:[#allocation2 - $0x3] sm:$0x10] %vm855, %v835
        %vm857 = vcmask 521477
        %858 = vst.msk [vmem:[#allocation2 - $0x4] sm:$0x20] %vm857, %v841
        %vm859 = vcmask 784902
        %860 = vst.msk [vmem:[#allocation2 - $0x5] sm:$0x40] %vm859, %v846
        %vm861 = vcmask 1048327
        %862 = vst.msk [vmem:[#allocation2 - $0x6] sm:$0x80] %vm861, %v851
        %863 = vrot.lane.b32.xlu0 %v769, 32
        %v864 = vpop.permute.xlu0 %863
        %v865 = vsel %vm773, %v864, 0
        %v868 = vsel %vm773, %v747, 0
        %870 = vmatpush.xpose.msra.mxu0 0.0
        %871 = vmatpush.xpose.msra.mxu0 0.0
        %872 = vmatpush.xpose.msra.mxu0 0.0
        %873 = vmatpush.xpose.msra.mxu0 0.0
        %874 = vmatpush.xpose.msra.mxu0 0.0
        %875 = vmatpush.xpose.msra.mxu0 0.0
        %876 = vmatpush.xpose.msra.mxu0 0.0
        %877 = vmatpush.xpose.msra.mxu0 0.0
        %878 = vmatpush.xpose.msra.mxu0 0.0
        %879 = vmatpush.xpose.msra.mxu0 0.0
        %880 = vmatpush.xpose.msra.mxu0 0.0
        %881 = vmatpush.xpose.msra.mxu0 0.0
        %882 = vmatpush.xpose.msra.mxu0 0.0
        %883 = vmatpush.xpose.msra.mxu0 0.0
        %884 = vmatpush.xpose.msra.mxu0 0.0
        %885 = vmatpush.xpose.msra.mxu0 %v868
        %886 = vmatmul.f32.gmra.mxu0 %v865
        %v887 = vpop.f32.mrf.mxu0
        %v888 = vadd.f32 0.0, %v887
        %889 = vdwg.mxu0
        %v890 = vsel %vm799, %v888, -inf
        %891 = vmax.xlane.f32.xlu0 %v890
        %v892 = vpop.xlane.xlu0 %891
        %v893 = vsub.f32 %v888, %v892
        %v894 = vmul.f32 %v893, 1.442695
        %v895 = vpow.pop %v894
        %v896 = vsel %vm799, %v895, 0.0
        %897 = vadd.xlane.f32.xlu0 %v896
        %v898 = vpop.xlane.xlu0 %897
        %v899 = vrcp.pop %v898
        %v900 = vmul.f32 %v895, %v899
        %901 = vrot.lane.b32.xlu0 %v747, 96
        %v902 = vpop.permute.xlu0 %901
        %v905 = vsel %vm799, %v900, 0
        %907 = vmatpush.msra.mxu0 0.0
        %908 = vmatpush.msra.mxu0 0.0
        %909 = vmatpush.msra.mxu0 0.0
        %910 = vmatpush.msra.mxu0 0.0
        %911 = vmatpush.msra.mxu0 0.0
        %912 = vmatpush.msra.mxu0 0.0
        %913 = vmatpush.msra.mxu0 0.0
        %914 = vmatpush.msra.mxu0 0.0
        %915 = vmatpush.msra.mxu0 0.0
        %916 = vmatpush.msra.mxu0 0.0
        %917 = vmatpush.msra.mxu0 0.0
        %918 = vmatpush.msra.mxu0 0.0
        %919 = vmatpush.msra.mxu0 0.0
        %920 = vmatpush.msra.mxu0 0.0
        %921 = vmatpush.msra.mxu0 0.0
        %922 = vmatpush.msra.mxu0 %v902
        %923 = vmatmul.f32.gmra.mxu0 %v905
        %v924 = vpop.f32.mrf.mxu0
        %v925 = vadd.f32 0.0, %v924
        %926 = vdwg.mxu0
        %927 = vst.msk [vmem:[#allocation2 + $0x2] sm:$0x1] %vm837, %v925
        %929 = vrot.lane.b32.xlu0 %v925, 32
        %v930 = vpop.permute.xlu0 %929
        %932 = vst.msk [vmem:[#allocation2 + $0x1] sm:$0x2] %vm843, %v930
        %933 = vrot.lane.b32.xlu0 %v925, 64
        %v934 = vpop.permute.xlu0 %933
        %936 = vst.msk [vmem:[#allocation2] sm:$0x4] %vm848, %v934
        %937 = vrot.lane.b32.xlu0 %v925, 96
        %v938 = vpop.permute.xlu0 %937
        %940 = vst.msk [vmem:[#allocation2 - $0x1] sm:$0x8] %vm853, %v938
        %941 = vst.msk [vmem:[#allocation2 - $0x1] sm:$0x10] %vm855, %v925
        %942 = vst.msk [vmem:[#allocation2 - $0x2] sm:$0x20] %vm857, %v930
        %943 = vst.msk [vmem:[#allocation2 - $0x3] sm:$0x40] %vm859, %v934
        %944 = vst.msk [vmem:[#allocation2 - $0x4] sm:$0x80] %vm861, %v938
        %v945 = vmul.f32 %v747, 0.17677669
        %947 = vrot.lane.b32.xlu0 %v945, 64
        %v948 = vpop.permute.xlu0 %947
        %949 = vrot.lane.b32.xlu0 %v747, 32
        %v950 = vpop.permute.xlu0 %949
        %v951 = vsel %vm773, %v948, 0
        %v953 = vsel %vm773, %v950, 0
        %955 = vmatpush.xpose.msra.mxu0 0.0
        %956 = vmatpush.xpose.msra.mxu0 0.0
        %957 = vmatpush.xpose.msra.mxu0 0.0
        %958 = vmatpush.xpose.msra.mxu0 0.0
        %959 = vmatpush.xpose.msra.mxu0 0.0
        %960 = vmatpush.xpose.msra.mxu0 0.0
        %961 = vmatpush.xpose.msra.mxu0 0.0
        %962 = vmatpush.xpose.msra.mxu0 0.0
        %963 = vmatpush.xpose.msra.mxu0 0.0
        %964 = vmatpush.xpose.msra.mxu0 0.0
        %965 = vmatpush.xpose.msra.mxu0 0.0
        %966 = vmatpush.xpose.msra.mxu0 0.0
        %967 = vmatpush.xpose.msra.mxu0 0.0
        %968 = vmatpush.xpose.msra.mxu0 0.0
        %969 = vmatpush.xpose.msra.mxu0 0.0
        %970 = vmatpush.xpose.msra.mxu0 %v953
        %971 = vmatmul.f32.gmra.mxu0 %v951
        %v972 = vpop.f32.mrf.mxu0
        %v973 = vadd.f32 0.0, %v972
        %974 = vdwg.mxu0
        %v975 = vsel %vm799, %v973, -inf
        %976 = vmax.xlane.f32.xlu0 %v975
        %v977 = vpop.xlane.xlu0 %976
        %v978 = vsub.f32 %v973, %v977
        %v979 = vmul.f32 %v978, 1.442695
        %v980 = vpow.pop %v979
        %v981 = vsel %vm799, %v980, 0.0
        %982 = vadd.xlane.f32.xlu0 %v981
        %v983 = vpop.xlane.xlu0 %982
        %v984 = vrcp.pop %v983
        %v985 = vmul.f32 %v980, %v984
        %v987 = vsel %vm799, %v985, 0
        %989 = vmatpush.msra.mxu0 0.0
        %990 = vmatpush.msra.mxu0 0.0
        %991 = vmatpush.msra.mxu0 0.0
        %992 = vmatpush.msra.mxu0 0.0
        %993 = vmatpush.msra.mxu0 0.0
        %994 = vmatpush.msra.mxu0 0.0
        %995 = vmatpush.msra.mxu0 0.0
        %996 = vmatpush.msra.mxu0 0.0
        %997 = vmatpush.msra.mxu0 0.0
        %998 = vmatpush.msra.mxu0 0.0
        %999 = vmatpush.msra.mxu0 0.0
        %1000 = vmatpush.msra.mxu0 0.0
        %1001 = vmatpush.msra.mxu0 0.0
        %1002 = vmatpush.msra.mxu0 0.0
        %1003 = vmatpush.msra.mxu0 0.0
        %1004 = vmatpush.msra.mxu0 %v767
        %1005 = vmatmul.f32.gmra.mxu0 %v987
        %v1006 = vpop.f32.mrf.mxu0
        %v1007 = vadd.f32 0.0, %v1006
        %1008 = vdwg.mxu0
        %1009 = vst.msk [vmem:[#allocation2 + $0x4] sm:$0x1] %vm837, %v1007
        %1011 = vrot.lane.b32.xlu0 %v1007, 32
        %v1012 = vpop.permute.xlu0 %1011
        %1014 = vst.msk [vmem:[#allocation2 + $0x3] sm:$0x2] %vm843, %v1012
        %1015 = vrot.lane.b32.xlu0 %v1007, 64
        %v1016 = vpop.permute.xlu0 %1015
        %1018 = vst.msk [vmem:[#allocation2 + $0x2] sm:$0x4] %vm848, %v1016
        %1019 = vrot.lane.b32.xlu0 %v1007, 96
        %v1020 = vpop.permute.xlu0 %1019
        %1022 = vst.msk [vmem:[#allocation2 + $0x1] sm:$0x8] %vm853, %v1020
        %1023 = vst.msk [vmem:[#allocation2 + $0x1] sm:$0x10] %vm855, %v1007
        %1024 = vst.msk [vmem:[#allocation2] sm:$0x20] %vm857, %v1012
        %1025 = vst.msk [vmem:[#allocation2 - $0x1] sm:$0x40] %vm859, %v1016
        %1026 = vst.msk [vmem:[#allocation2 - $0x2] sm:$0x80] %vm861, %v1020
        %v1027 = vmul.f32 %v767, 0.17677669
        %1029 = vrot.lane.b32.xlu0 %v1027, 96
        %v1030 = vpop.permute.xlu0 %1029
        %1032 = vrot.lane.b32.xlu0 %v767, 64
        %v1033 = vpop.permute.xlu0 %1032
        %v1034 = vsel %vm773, %v1030, 0
        %v1036 = vsel %vm773, %v1033, 0
        %1038 = vmatpush.xpose.msra.mxu0 0.0
        %1039 = vmatpush.xpose.msra.mxu0 0.0
        %1040 = vmatpush.xpose.msra.mxu0 0.0
        %1041 = vmatpush.xpose.msra.mxu0 0.0
        %1042 = vmatpush.xpose.msra.mxu0 0.0
        %1043 = vmatpush.xpose.msra.mxu0 0.0
        %1044 = vmatpush.xpose.msra.mxu0 0.0
        %1045 = vmatpush.xpose.msra.mxu0 0.0
        %1046 = vmatpush.xpose.msra.mxu0 0.0
        %1047 = vmatpush.xpose.msra.mxu0 0.0
        %1048 = vmatpush.xpose.msra.mxu0 0.0
        %1049 = vmatpush.xpose.msra.mxu0 0.0
        %1050 = vmatpush.xpose.msra.mxu0 0.0
        %1051 = vmatpush.xpose.msra.mxu0 0.0
        %1052 = vmatpush.xpose.msra.mxu0 0.0
        %1053 = vmatpush.xpose.msra.mxu0 %v1036
        %1054 = vmatmul.f32.gmra.mxu0 %v1034
        %v1055 = vpop.f32.mrf.mxu0
        %v1056 = vadd.f32 0.0, %v1055
        %1057 = vdwg.mxu0
        %v1058 = vsel %vm799, %v1056, -inf
        %1059 = vmax.xlane.f32.xlu0 %v1058
        %v1060 = vpop.xlane.xlu0 %1059
        %v1061 = vsub.f32 %v1056, %v1060
        %v1062 = vmul.f32 %v1061, 1.442695
        %v1063 = vpow.pop %v1062
        %v1064 = vsel %vm799, %v1063, 0.0
        %1065 = vadd.xlane.f32.xlu0 %v1064
        %v1066 = vpop.xlane.xlu0 %1065
        %v1067 = vrcp.pop %v1066
        %v1068 = vmul.f32 %v1063, %v1067
        %1069 = vrot.lane.b32.xlu0 %v767, 32
        %v1070 = vpop.permute.xlu0 %1069
        %v1073 = vsel %vm799, %v1068, 0
        %1075 = vmatpush.msra.mxu0 0.0
        %1076 = vmatpush.msra.mxu0 0.0
        %1077 = vmatpush.msra.mxu0 0.0
        %1078 = vmatpush.msra.mxu0 0.0
        %1079 = vmatpush.msra.mxu0 0.0
        %1080 = vmatpush.msra.mxu0 0.0
        %1081 = vmatpush.msra.mxu0 0.0
        %1082 = vmatpush.msra.mxu0 0.0
        %1083 = vmatpush.msra.mxu0 0.0
        %1084 = vmatpush.msra.mxu0 0.0
        %1085 = vmatpush.msra.mxu0 0.0
        %1086 = vmatpush.msra.mxu0 0.0
        %1087 = vmatpush.msra.mxu0 0.0
        %1088 = vmatpush.msra.mxu0 0.0
        %1089 = vmatpush.msra.mxu0 0.0
        %1090 = vmatpush.msra.mxu0 %v1070
        %1091 = vmatmul.f32.gmra.mxu0 %v1073
        %v1092 = vpop.f32.mrf.mxu0
        %v1093 = vadd.f32 0.0, %v1092
        %1094 = vdwg.mxu0
        %1095 = vst.msk [vmem:[#allocation2 + $0x6] sm:$0x1] %vm837, %v1093
        %1097 = vrot.lane.b32.xlu0 %v1093, 32
        %v1098 = vpop.permute.xlu0 %1097
        %1100 = vst.msk [vmem:[#allocation2 + $0x5] sm:$0x2] %vm843, %v1098
        %1101 = vrot.lane.b32.xlu0 %v1093, 64
        %v1102 = vpop.permute.xlu0 %1101
        %1104 = vst.msk [vmem:[#allocation2 + $0x4] sm:$0x4] %vm848, %v1102
        %1105 = vrot.lane.b32.xlu0 %v1093, 96
        %v1106 = vpop.permute.xlu0 %1105
        %1108 = vst.msk [vmem:[#allocation2 + $0x3] sm:$0x8] %vm853, %v1106
        %1109 = vst.msk [vmem:[#allocation2 + $0x3] sm:$0x10] %vm855, %v1093
        %1110 = vst.msk [vmem:[#allocation2 + $0x2] sm:$0x20] %vm857, %v1098
        %1111 = vst.msk [vmem:[#allocation2 + $0x1] sm:$0x40] %vm859, %v1102
        %1112 = vst.msk [vmem:[#allocation2] sm:$0x80] %vm861, %v1106
        %v1113 = vld [vmem:[#allocation2] sm:$0xff]
        %v1114 = vld [vmem:[%s613] sm:$0xff]
        %v1115 = vld [vmem:[%s613 + $0x8] sm:$0xff]
        %v1116 = vld [vmem:[%s613 + $0x10] sm:$0xff]
        %v1117 = vld [vmem:[%s613 + $0x18] sm:$0xff]
        %v1118 = vld [vmem:[%s613 + $0x20] sm:$0xff]
        %v1119 = vld [vmem:[%s613 + $0x28] sm:$0xff]
        %v1120 = vld [vmem:[%s613 + $0x30] sm:$0xff]
        %v1121 = vld [vmem:[%s613 + $0x38] sm:$0xff]
        %v1122 = vld [vmem:[%s613 + $0x40] sm:$0xff]
        %v1123 = vld [vmem:[%s613 + $0x48] sm:$0xff]
        %v1124 = vld [vmem:[%s613 + $0x50] sm:$0xff]
        %v1125 = vld [vmem:[%s613 + $0x58] sm:$0xff]
        %v1126 = vld [vmem:[%s613 + $0x60] sm:$0xff]
        %v1127 = vld [vmem:[%s613 + $0x68] sm:$0xff]
        %v1128 = vld [vmem:[%s613 + $0x70] sm:$0xff]
        %v1129 = vld [vmem:[%s613 + $0x78] sm:$0xff]
        %v1130 = vld [vmem:[%s616] sm:$0x1]
        %v1132 = vperm.slane %v1130, 0
        %1134 = vmatpush.msra.mxu0 %v1129
        %1135 = vmatpush.msra.mxu0 %v1128
        %1136 = vmatpush.msra.mxu0 %v1127
        %1137 = vmatpush.msra.mxu0 %v1126
        %1138 = vmatpush.msra.mxu0 %v1125
        %1139 = vmatpush.msra.mxu0 %v1124
        %1140 = vmatpush.msra.mxu0 %v1123
        %1141 = vmatpush.msra.mxu0 %v1122
        %1142 = vmatpush.msra.mxu0 %v1121
        %1143 = vmatpush.msra.mxu0 %v1120
        %1144 = vmatpush.msra.mxu0 %v1119
        %1145 = vmatpush.msra.mxu0 %v1118
        %1146 = vmatpush.msra.mxu0 %v1117
        %1147 = vmatpush.msra.mxu0 %v1116
        %1148 = vmatpush.msra.mxu0 %v1115
        %1149 = vmatpush.msra.mxu0 %v1114
        %1150 = vmatmul.f32.gmra.mxu0 %v1113
        %v1151 = vpop.f32.mrf.mxu0
        %v1152 = vadd.f32 %v1132, %v1151
        %1153 = vdwg.mxu0
        %v1154 = vld [vmem:[%s619] sm:$0x1]
        %v1155 = vld [vmem:[%s622] sm:$0x1]
        %v1156 = vadd.f32 %v1152, %v652
        %1157 = vadd.xlane.f32.xlu0 %v1156
        %v1158 = vpop.xlane.xlu0 %1157
        %v1159 = vrcp.pop 128.0
        %v1160 = vmul.f32 128.0, %v1159
        %v1161 = vsub.f32 1.0, %v1160
        %v1162 = vmul.f32 %v1159, %v1161
        %v1163 = vadd.f32 %v1159, %v1162
        %vm1164 = vweird.f32 %v1159
        %v1165 = vsel %vm1164, %v1159, %v1163
        %v1166 = vmul.f32 %v1158, %v1165
        %v1167 = vmul.f32 %v1156, %v1156
        %1168 = vadd.xlane.f32.xlu0 %v1167
        %v1169 = vpop.xlane.xlu0 %1168
        %v1170 = vmul.f32 %v1169, %v1165
        %v1171 = vmul.f32 %v1166, %v1166
        %v1172 = vsub.f32 %v1170, %v1171
        %v1173 = vadd.f32 %v1172, 1e-05
        %v1174 = vrsqrt.pop %v1173
        %v1175 = vmul.f32 %v1174, %v1173
        %v1176 = vmul.f32 %v1175, %v1174
        %v1177 = vmul.f32 0.5, %v1176
        %v1178 = vsub.f32 1.5, %v1177
        %v1179 = vmul.f32 %v1174, %v1178
        %vm1180 = vweird.f32 %v1173
        %vm1181 = vweird.f32 %v1174
        %vm1182 = vmor %vm1180, %vm1181
        %v1183 = vsel %vm1182, %v1174, %v1179
        %v1185 = vperm.slane %v1154, 0
        %v1187 = vmul.f32 %v1185, %v1183
        %v1188 = vmul.f32 %v1156, %v1187
        %v1189 = vmul.f32 %v1166, %v1187
        %v1191 = vperm.slane %v1155, 0
        %v1193 = vsub.f32 %v1191, %v1189
        %v1194 = vadd.f32 %v1188, %v1193
        %v1195 = vld [vmem:[%s627] sm:$0xff]
        %v1196 = vld [vmem:[%s627 + $0x8] sm:$0xff]
        %v1197 = vld [vmem:[%s627 + $0x10] sm:$0xff]
        %v1198 = vld [vmem:[%s627 + $0x18] sm:$0xff]
        %v1199 = vld [vmem:[%s627 + $0x20] sm:$0xff]
        %v1200 = vld [vmem:[%s627 + $0x28] sm:$0xff]
        %v1201 = vld [vmem:[%s627 + $0x30] sm:$0xff]
        %v1202 = vld [vmem:[%s627 + $0x38] sm:$0xff]
        %v1203 = vld [vmem:[%s627 + $0x40] sm:$0xff]
        %v1204 = vld [vmem:[%s627 + $0x48] sm:$0xff]
        %v1205 = vld [vmem:[%s627 + $0x50] sm:$0xff]
        %v1206 = vld [vmem:[%s627 + $0x58] sm:$0xff]
        %v1207 = vld [vmem:[%s627 + $0x60] sm:$0xff]
        %v1208 = vld [vmem:[%s627 + $0x68] sm:$0xff]
        %v1209 = vld [vmem:[%s627 + $0x70] sm:$0xff]
        %v1210 = vld [vmem:[%s627 + $0x78] sm:$0xff]
        %v1211 = vld [vmem:[%s627 + $0x80] sm:$0xff]
        %v1212 = vld [vmem:[%s627 + $0x88] sm:$0xff]
        %v1213 = vld [vmem:[%s627 + $0x90] sm:$0xff]
        %v1214 = vld [vmem:[%s627 + $0x98] sm:$0xff]
        %v1215 = vld [vmem:[%s627 + $0xa0] sm:$0xff]
        %v1216 = vld [vmem:[%s627 + $0xa8] sm:$0xff]
        %v1217 = vld [vmem:[%s627 + $0xb0] sm:$0xff]
        %v1218 = vld [vmem:[%s627 + $0xb8] sm:$0xff]
        %v1219 = vld [vmem:[%s627 + $0xc0] sm:$0xff]
        %v1220 = vld [vmem:[%s627 + $0xc8] sm:$0xff]
        %v1221 = vld [vmem:[%s627 + $0xd0] sm:$0xff]
        %v1222 = vld [vmem:[%s627 + $0xd8] sm:$0xff]
        %v1223 = vld [vmem:[%s627 + $0xe0] sm:$0xff]
        %v1224 = vld [vmem:[%s627 + $0xe8] sm:$0xff]
        %v1225 = vld [vmem:[%s627 + $0xf0] sm:$0xff]
        %v1226 = vld [vmem:[%s627 + $0xf8] sm:$0xff]
        %v1227 = vld [vmem:[%s631] sm:$0x3]
        %v1229 = vperm.slane %v1227, 0
        %v1230 = vperm.slane %v1227, 1
        %1233 = vmatpush.msra.mxu0 %v1225
        %1234 = vmatpush.msra.mxu0 %v1223
        %1235 = vmatpush.msra.mxu0 %v1221
        %1236 = vmatpush.msra.mxu0 %v1219
        %1237 = vmatpush.msra.mxu0 %v1217
        %1238 = vmatpush.msra.mxu0 %v1215
        %1239 = vmatpush.msra.mxu0 %v1213
        %1240 = vmatpush.msra.mxu0 %v1211
        %1241 = vmatpush.msra.mxu0 %v1209
        %1242 = vmatpush.msra.mxu0 %v1207
        %1243 = vmatpush.msra.mxu0 %v1205
        %1244 = vmatpush.msra.mxu0 %v1203
        %1245 = vmatpush.msra.mxu0 %v1201
        %1246 = vmatpush.msra.mxu0 %v1199
        %1247 = vmatpush.msra.mxu0 %v1197
        %1248 = vmatpush.msra.mxu0 %v1195
        %1249 = vmatmul.f32.gmra.mxu0 %v1194
        %v1250 = vpop.f32.mrf.mxu0
        %v1251 = vadd.f32 %v1229, %v1250
        %1252 = vdwg.mxu0
        %1253 = vmatpush.msra.mxu0 %v1226
        %1254 = vmatpush.msra.mxu0 %v1224
        %1255 = vmatpush.msra.mxu0 %v1222
        %1256 = vmatpush.msra.mxu0 %v1220
        %1257 = vmatpush.msra.mxu0 %v1218
        %1258 = vmatpush.msra.mxu0 %v1216
        %1259 = vmatpush.msra.mxu0 %v1214
        %1260 = vmatpush.msra.mxu0 %v1212
        %1261 = vmatpush.msra.mxu0 %v1210
        %1262 = vmatpush.msra.mxu0 %v1208
        %1263 = vmatpush.msra.mxu0 %v1206
        %1264 = vmatpush.msra.mxu0 %v1204
        %1265 = vmatpush.msra.mxu0 %v1202
        %1266 = vmatpush.msra.mxu0 %v1200
        %1267 = vmatpush.msra.mxu0 %v1198
        %1268 = vmatpush.msra.mxu0 %v1196
        %1269 = vmatmul.f32.gmra.mxu0 %v1194
        %v1270 = vpop.f32.mrf.mxu0
        %v1271 = vadd.f32 %v1230, %v1270
        %1272 = vdwg.mxu0
        %v1273 = vmax.f32 %v1251, 0.0
        %v1274 = vmax.f32 %v1271, 0.0
        %v1275 = vld [vmem:[%s636] sm:$0xff]
        %v1276 = vld [vmem:[%s636 + $0x8] sm:$0xff]
        %v1277 = vld [vmem:[%s636 + $0x10] sm:$0xff]
        %v1278 = vld [vmem:[%s636 + $0x18] sm:$0xff]
        %v1279 = vld [vmem:[%s636 + $0x20] sm:$0xff]
        %v1280 = vld [vmem:[%s636 + $0x28] sm:$0xff]
        %v1281 = vld [vmem:[%s636 + $0x30] sm:$0xff]
        %v1282 = vld [vmem:[%s636 + $0x38] sm:$0xff]
        %v1283 = vld [vmem:[%s636 + $0x40] sm:$0xff]
        %v1284 = vld [vmem:[%s636 + $0x48] sm:$0xff]
        %v1285 = vld [vmem:[%s636 + $0x50] sm:$0xff]
        %v1286 = vld [vmem:[%s636 + $0x58] sm:$0xff]
        %v1287 = vld [vmem:[%s636 + $0x60] sm:$0xff]
        %v1288 = vld [vmem:[%s636 + $0x68] sm:$0xff]
        %v1289 = vld [vmem:[%s636 + $0x70] sm:$0xff]
        %v1290 = vld [vmem:[%s636 + $0x78] sm:$0xff]
        %v1291 = vld [vmem:[%s636 + $0x80] sm:$0xff]
        %v1292 = vld [vmem:[%s636 + $0x88] sm:$0xff]
        %v1293 = vld [vmem:[%s636 + $0x90] sm:$0xff]
        %v1294 = vld [vmem:[%s636 + $0x98] sm:$0xff]
        %v1295 = vld [vmem:[%s636 + $0xa0] sm:$0xff]
        %v1296 = vld [vmem:[%s636 + $0xa8] sm:$0xff]
        %v1297 = vld [vmem:[%s636 + $0xb0] sm:$0xff]
        %v1298 = vld [vmem:[%s636 + $0xb8] sm:$0xff]
        %v1299 = vld [vmem:[%s636 + $0xc0] sm:$0xff]
        %v1300 = vld [vmem:[%s636 + $0xc8] sm:$0xff]
        %v1301 = vld [vmem:[%s636 + $0xd0] sm:$0xff]
        %v1302 = vld [vmem:[%s636 + $0xd8] sm:$0xff]
        %v1303 = vld [vmem:[%s636 + $0xe0] sm:$0xff]
        %v1304 = vld [vmem:[%s636 + $0xe8] sm:$0xff]
        %v1305 = vld [vmem:[%s636 + $0xf0] sm:$0xff]
        %v1306 = vld [vmem:[%s636 + $0xf8] sm:$0xff]
        %v1307 = vld [vmem:[%s639] sm:$0x1]
        %v1309 = vperm.slane %v1307, 0
        %1311 = vmatpush.msra.mxu0 %v1290
        %1312 = vmatpush.msra.mxu0 %v1289
        %1313 = vmatpush.msra.mxu0 %v1288
        %1314 = vmatpush.msra.mxu0 %v1287
        %1315 = vmatpush.msra.mxu0 %v1286
        %1316 = vmatpush.msra.mxu0 %v1285
        %1317 = vmatpush.msra.mxu0 %v1284
        %1318 = vmatpush.msra.mxu0 %v1283
        %1319 = vmatpush.msra.mxu0 %v1282
        %1320 = vmatpush.msra.mxu0 %v1281
        %1321 = vmatpush.msra.mxu0 %v1280
        %1322 = vmatpush.msra.mxu0 %v1279
        %1323 = vmatpush.msra.mxu0 %v1278
        %1324 = vmatpush.msra.mxu0 %v1277
        %1325 = vmatpush.msra.mxu0 %v1276
        %1326 = vmatpush.msra.mxu0 %v1275
        %1327 = vmatmul.f32.gmra.mxu0 %v1273
        %v1328 = vpop.f32.mrf.mxu0
        %v1329 = vadd.f32 %v1309, %v1328
        %1330 = vdwg.mxu0
        %1331 = vmatpush.msra.mxu0 %v1306
        %1332 = vmatpush.msra.mxu0 %v1305
        %1333 = vmatpush.msra.mxu0 %v1304
        %1334 = vmatpush.msra.mxu0 %v1303
        %1335 = vmatpush.msra.mxu0 %v1302
        %1336 = vmatpush.msra.mxu0 %v1301
        %1337 = vmatpush.msra.mxu0 %v1300
        %1338 = vmatpush.msra.mxu0 %v1299
        %1339 = vmatpush.msra.mxu0 %v1298
        %1340 = vmatpush.msra.mxu0 %v1297
        %1341 = vmatpush.msra.mxu0 %v1296
        %1342 = vmatpush.msra.mxu0 %v1295
        %1343 = vmatpush.msra.mxu0 %v1294
        %1344 = vmatpush.msra.mxu0 %v1293
        %1345 = vmatpush.msra.mxu0 %v1292
        %1346 = vmatpush.msra.mxu0 %v1291
        %1347 = vmatmul.f32.gmra.mxu0 %v1274
        %v1348 = vpop.f32.mrf.mxu0
        %v1349 = vadd.f32 %v1329, %v1348
        %1350 = vdwg.mxu0
        %v1351 = vld [vmem:[%s642] sm:$0x1]
        %v1352 = vld [vmem:[%s645] sm:$0x1]
        %v1353 = vadd.f32 %v1349, %v1194
        %1354 = vadd.xlane.f32.xlu0 %v1353
        %v1355 = vpop.xlane.xlu0 %1354
        %v1356 = vmul.f32 %v1355, %v1165
        %v1357 = vmul.f32 %v1353, %v1353
        %1358 = vadd.xlane.f32.xlu0 %v1357
        %v1359 = vpop.xlane.xlu0 %1358
        %v1360 = vmul.f32 %v1359, %v1165
        %v1361 = vmul.f32 %v1356, %v1356
        %v1362 = vsub.f32 %v1360, %v1361
        %v1363 = vadd.f32 %v1362, 1e-05
        %v1364 = vrsqrt.pop %v1363
        %v1365 = vmul.f32 %v1364, %v1363
        %v1366 = vmul.f32 %v1365, %v1364
        %v1367 = vmul.f32 0.5, %v1366
        %v1368 = vsub.f32 1.5, %v1367
        %v1369 = vmul.f32 %v1364, %v1368
        %vm1370 = vweird.f32 %v1363
        %vm1371 = vweird.f32 %v1364
        %vm1372 = vmor %vm1370, %vm1371
        %v1373 = vsel %vm1372, %v1364, %v1369
        %v1375 = vperm.slane %v1351, 0
        %v1377 = vmul.f32 %v1375, %v1373
        %v1378 = vmul.f32 %v1353, %v1377
        %v1379 = vmul.f32 %v1356, %v1377
        %v1381 = vperm.slane %v1352, 0
        %v1383 = vsub.f32 %v1381, %v1379
        %v1384 = vadd.f32 %v1378, %v1383
        %1385 = vst [vmem:[%s595] sm:$0xff] %v1384
        %s1386 = sand.u32 %s385, 1
        %s1387 = scalar_lea.sflag [#allocation4], %s1386
        %s1388 = sand.u32 %s385, 1
        %s1389 = smul.addr %s1388, 8
        %s1390 = scalar_lea.vmem [#allocation3], %s1389
        // Predicated region
        $region77: #{transformer_encoder_forward.1} parent=71 // pred_check
          %p1391 = pneg %p395
        $region78: #{transformer_encoder_forward.1} parent=71 // pred_check_branch
          %1393 = sbr.rel (%p1391) target = $region80
        $region79: #{transformer_encoder_forward.1} parent=71 // pred_region
          %1395 = vsyncadd %s1387, 0
          %s1396 = smul.addr %s31, 8
          %s1397 = scalar_lea.hbm %s13, %s1396
          %s1399 = sshll.u32 %s1390, 4
          %s1400 = int_to_ptr.vmem [resolvable:$true] %s1399
          %s1401 = sshll.u32 %s1397, 4
          %s1402 = int_to_ptr.hbm [resolvable:$true] %s1401
          %1404 = dma.vmem_to_hbm [thread:$0]  %s1400, 128, %s1402, %s1387
        $region80: #{transformer_encoder_forward.1} parent=71 // pred_fallthru
          _
      $region72: #{transformer_encoder_forward.1} parent=5 // pred_fallthru
        _
      %p1405 = scmp.le.s32.totalorder 2, %s22
      // Predicated region
      $region81: #{transformer_encoder_forward.1} parent=5 // pred_check
        %p1406 = pneg %p1405
      $region82: #{transformer_encoder_forward.1} parent=5 // pred_check_branch
        %1408 = sbr.rel (%p1406) target = $region84
      $region83: #{transformer_encoder_forward.1} parent=5 // pred_region
        %s1409 = ssub.s32 %s22, 2
        // Predicated region
        $region85: #{transformer_encoder_forward.1} parent=83 // pred_check
          %p1410 = pneg %p401
        $region86: #{transformer_encoder_forward.1} parent=83 // pred_check_branch
          %1412 = sbr.rel (%p1410) target = $region88
        $region87: #{transformer_encoder_forward.1} parent=83 // pred_region
          %s1413 = sand.u32 %s386, 1
          %s1414 = scalar_lea.sflag [#allocation4], %s1413
          %s1415 = sand.u32 %s386, 1
          %s1416 = smul.addr %s1415, 8
          %s1417 = scalar_lea.vmem [#allocation3], %s1416
          %1419 = dma.done %s1414, 128
        $region88: #{transformer_encoder_forward.1} parent=83 // pred_fallthru
          _
      $region84: #{transformer_encoder_forward.1} parent=5 // pred_fallthru
        _
    $region6: #{transformer_encoder_forward.1} parent=1 // loop_footer
      %s26 = sadd.s32 1, %s22
    $region7: #{transformer_encoder_forward.1} parent=1 // loop_footer_branch
      %21 = sbr.rel target = $region3
    $region8: #{transformer_encoder_forward.1} parent=1 // loop_exit
      _
    %1420 = vsyncpa [#allocation4], 1
    %s1421 = scalar_lea.sflag [#allocation4], 1
    %1422 = vsyncpa %s1421, 1

</llo_original>
